<compile_context>
chip_gen: v6e
topology: v6e:2x2x1
jax: 0.10.0
libtpu: 0.0.40
codegen_flags: <defaults>
</compile_context>

<pallas_src>
import functools

import jax
import jax.numpy as jnp
from jax.experimental import pallas as pl
from jax.experimental.pallas import tpu as pltpu

BN_EPS = 1e-5
# MXU operand dtype. bfloat16 doubles MXU throughput and halves activation
# bandwidth; all accumulation and BN statistics stay in float32.  Set to
# jnp.float32 for strict parity with the f32 PyTorch module.
MATMUL_DTYPE = jnp.bfloat16


@functools.lru_cache(maxsize=None)
def _vmem_limit_bytes():
    """~75% of physical VMEM: ~96 MiB on v5e/v6e (128 MiB), ~48 MiB on v7x."""
    try:
        cap = int(pltpu.get_tpu_info().vmem_capacity_bytes)
    except Exception:  # info query unavailable -> conservative default
        cap = 64 * 1024 * 1024
    return cap * 3 // 4


def _conv3d_pre_bn(x, w, pre_scale=None, pre_shift=None):
    """3x3x3 'same' Conv3d (pre-BatchNorm), with optional fused input BN+ReLU.

    x : (N, D, H, W, Cin) UNPADDED activation in the MXU dtype.
    w : (3, 3, 3, Cin, Cout) conv weight (f32).
    pre_scale / pre_shift : optional (Cin,) f32.  If given, each loaded plane
        is transformed with relu(x * scale + shift) before the conv — i.e. the
        previous layer's training-mode BatchNorm + ReLU is fused in.  The
        conv's zero padding is applied to the *activated* values (halo built
        from literal zeros after the activation), matching PyTorch.

    Returns:
      y     (N, D, H, W, Cout) pre-BN conv output in the MXU dtype.
      stats (N, D, 2, Cout)    f32 per-(n, d) [sum, sum-of-squares] over HW.
    """
    N, D, H, W, Cin = x.shape
    HW = H * W
    Cout = w.shape[-1]
    mm_dtype = x.dtype
    fuse_pre = pre_scale is not None

    # (3, 3, 3, Cin, Cout) -> (3, 9*Cin, Cout); K row index = (kh*3+kw)*Cin + c,
    # matching the channel-concat order of the im2col below.
    wk = w.reshape(3, 9 * Cin, Cout).astype(mm_dtype)

    def kernel(*refs):
        if fuse_pre:
            x_ref, w_ref, sc_ref, sh_ref, y_ref, st_ref, acc_ref = refs
        else:
            x_ref, w_ref, y_ref, st_ref, acc_ref = refs

        d = pl.program_id(1)
        kd = pl.program_id(2)

        @pl.when(kd == 0)
        def _init():
            acc_ref[...] = jnp.zeros_like(acc_ref)

        dz = d + kd - 1                                     # source depth
        valid = jnp.logical_and(dz >= 0, dz < D)

        @pl.when(valid)
        def _tap():
            plane = x_ref[...]                    # (H, W, Cin) in mm_dtype
            if fuse_pre:
                # previous layer's BatchNorm + ReLU, fused into the plane load
                plane = jnp.maximum(
                    plane.astype(jnp.float32) * sc_ref[...] + sh_ref[...],
                    0.0).astype(mm_dtype)
            # zero-padded (H+2, W+2, Cin) plane built in registers (no HBM pad)
            zc = jnp.zeros((H, 1, Cin), mm_dtype)
            zr = jnp.zeros((1, W + 2, Cin), mm_dtype)
            padded = jnp.concatenate(
                [zr, jnp.concatenate([zc, plane, zc], axis=1), zr], axis=0)
            # in-VMEM im2col: 9 shifted windows concatenated along channels
            # -> one (HW, 9*Cin) x (9*Cin, Cout) MXU GEMM (K = 9*Cin).
            cols = [padded[kh:kh + H, kw:kw + W, :].reshape(HW, Cin)
                    for kh in range(3) for kw in range(3)]
            patch = jnp.concatenate(cols, axis=-1)
            acc_ref[...] += jnp.dot(patch, w_ref[kd],
                                    preferred_element_type=jnp.float32)

        @pl.when(kd == pl.num_programs(2) - 1)
        def _finalize():
            acc = acc_ref[...]
            y_ref[...] = acc.reshape(H, W, Cout).astype(y_ref.dtype)
            # one-pass BN statistics, single (2, Cout) store
            st_ref[...] = jnp.concatenate(
                [jnp.sum(acc, axis=0, keepdims=True),
                 jnp.sum(acc * acc, axis=0, keepdims=True)], axis=0)

    itemsize = jnp.dtype(mm_dtype).itemsize
    flops = 2 * N * D * HW * 27 * Cin * Cout
    bytes_accessed = (3 * N * D * HW * Cin * itemsize      # planes (3 depth taps)
                      + 27 * Cin * Cout * itemsize         # weights (resident)
                      + N * D * HW * Cout * itemsize       # y write (mm_dtype)
                      + N * D * 2 * Cout * 4)              # stats write

    in_specs = [
        # depth tap d + kd - 1, clamped at the volume boundary; out-of-range
        # taps are skipped inside the kernel via pl.when(valid).
        pl.BlockSpec(
            (None, None, H, W, Cin),
            lambda n, d, kd: (n,
                              jnp.maximum(jnp.minimum(d + kd - 1, D - 1), 0),
                              0, 0, 0)),
        # full conv weight, constant index_map -> single DMA, VMEM-resident
        pl.BlockSpec((3, 9 * Cin, Cout), lambda n, d, kd: (0, 0, 0)),
    ]
    args = [x, wk]
    if fuse_pre:
        in_specs += [pl.BlockSpec((1, Cin), lambda n, d, kd: (0, 0)),
                     pl.BlockSpec((1, Cin), lambda n, d, kd: (0, 0))]
        args += [pre_scale.astype(jnp.float32).reshape(1, Cin),
                 pre_shift.astype(jnp.float32).reshape(1, Cin)]

    y, stats = pl.pallas_call(
        kernel,
        out_shape=(
            jax.ShapeDtypeStruct((N, D, H, W, Cout), mm_dtype),
            jax.ShapeDtypeStruct((N, D, 2, Cout), jnp.float32),
        ),
        grid=(N, D, 3),
        in_specs=in_specs,
        out_specs=(
            pl.BlockSpec((None, None, H, W, Cout),
                         lambda n, d, kd: (n, d, 0, 0, 0)),
            pl.BlockSpec((None, None, 2, Cout),
                         lambda n, d, kd: (n, d, 0, 0)),
        ),
        scratch_shapes=[pltpu.VMEM((HW, Cout), jnp.float32)],
        compiler_params=pltpu.CompilerParams(
            dimension_semantics=("parallel", "parallel", "arbitrary"),
            vmem_limit_bytes=_vmem_limit_bytes()),
        cost_estimate=pl.CostEstimate(flops=flops, transcendentals=0,
                                      bytes_accessed=bytes_accessed),
    )(*args)
    return y, stats


def _bn_scale_shift(stats, gamma, beta, count):
    """Fold per-(n, d) [sum, sumsq] partials into per-channel scale/shift."""
    s = jnp.sum(stats.astype(jnp.float32), axis=(0, 1))       # (2, C)
    mean = s[0] / count
    var = jnp.maximum(s[1] / count - mean * mean, 0.0)         # biased variance
    scale = gamma.astype(jnp.float32) * jax.lax.rsqrt(var + BN_EPS)
    shift = beta.astype(jnp.float32) - mean * scale
    return scale, shift


def _bn_relu_apply(y, scale, shift, out_dtype):
    """Tiled elementwise normalize + affine + ReLU (memory-bound pass)."""
    N, D, H, W, C = y.shape

    def kernel(y_ref, sc_ref, sh_ref, o_ref):
        o_ref[...] = jnp.maximum(
            y_ref[...].astype(jnp.float32) * sc_ref[...] + sh_ref[...],
            0.0).astype(o_ref.dtype)

    M = N * D * H * W
    flops = 3 * M * C
    bytes_accessed = (M * C * jnp.dtype(y.dtype).itemsize
                      + M * C * jnp.dtype(out_dtype).itemsize + 8 * C)

    return pl.pallas_call(
        kernel,
        out_shape=jax.ShapeDtypeStruct((N, D, H, W, C), out_dtype),
        grid=(N, D),
        in_specs=[
            pl.BlockSpec((None, None, H, W, C), lambda n, d: (n, d, 0, 0, 0)),
            pl.BlockSpec((1, C), lambda n, d: (0, 0)),
            pl.BlockSpec((1, C), lambda n, d: (0, 0)),
        ],
        out_specs=pl.BlockSpec((None, None, H, W, C),
                               lambda n, d: (n, d, 0, 0, 0)),
        compiler_params=pltpu.CompilerParams(
            dimension_semantics=("parallel", "parallel"),
            vmem_limit_bytes=_vmem_limit_bytes()),
        cost_estimate=pl.CostEstimate(flops=flops, transcendentals=0,
                                      bytes_accessed=bytes_accessed),
    )(y, scale.reshape(1, C), shift.reshape(1, C))


def double_convolution(x_ncdhw, params, matmul_dtype=MATMUL_DTYPE):
    """Pallas implementation of DoubleConvolution.forward (NCDHW in / out)."""
    x = jnp.transpose(x_ncdhw, (0, 2, 3, 4, 1)).astype(matmul_dtype)   # NDHWC
    N, D, H, W, _ = x.shape
    M = N * D * H * W

    # Layer 1: conv (pre-BN; conv bias cancelled exactly by batch-stat BN).
    y1, st1 = _conv3d_pre_bn(x, params["w1"])
    sc1, sh1 = _bn_scale_shift(st1, params["g1"], params["b1"], M)

    # Layer 2: conv with layer-1's BatchNorm + ReLU fused into the plane load
    # (the a1 activation is never materialized in HBM).
    y2, st2 = _conv3d_pre_bn(y1, params["w2"], pre_scale=sc1, pre_shift=sh1)
    sc2, sh2 = _bn_scale_shift(st2, params["g2"], params["b2"], M)

    out = _bn_relu_apply(y2, sc2, sh2, out_dtype=jnp.float32)
    return jnp.transpose(out, (0, 4, 1, 2, 3))                          # NCDHW


def double_convolution_reference(x_ncdhw, params, matmul_dtype=MATMUL_DTYPE):
    """Pure-JAX reference (includes the conv bias; BN in training mode)."""
    def layer(x, w, cb, g, b):
        y = jax.lax.conv_general_dilated(
            x.astype(matmul_dtype), w.astype(matmul_dtype),
            window_strides=(1, 1, 1),
            padding=((1, 1), (1, 1), (1, 1)),
            dimension_numbers=("NDHWC", "DHWIO", "NDHWC"),
            preferred_element_type=jnp.float32)
        y = y + cb
        mean = jnp.mean(y, axis=(0, 1, 2, 3), keepdims=True)
        var = jnp.mean((y - mean) ** 2, axis=(0, 1, 2, 3), keepdims=True)
        y = (y - mean) * jax.lax.rsqrt(var + BN_EPS) * g + b
        return jnp.maximum(y, 0.0)

    x = jnp.transpose(x_ncdhw, (0, 2, 3, 4, 1))
    a1 = layer(x, params["w1"], params["cb1"], params["g1"], params["b1"])
    a1 = a1.astype(matmul_dtype)   # intermediate dtype matches the kernel path
    a2 = layer(a1, params["w2"], params["cb2"], params["g2"], params["b2"])
    return jnp.transpose(a2, (0, 4, 1, 2, 3))


def init_params(key, in_channel, mid_channel, out_channel):
    ks = jax.random.split(key, 8)
    scale1 = 1.0 / jnp.sqrt(in_channel * 27.0)
    scale2 = 1.0 / jnp.sqrt(mid_channel * 27.0)
    return {
        # conv weights stored as (kD, kH, kW, Cin, Cout)
        "w1": jax.random.uniform(ks[0], (3, 3, 3, in_channel, mid_channel),
                                 jnp.float32, -scale1, scale1),
        "cb1": jax.random.uniform(ks[1], (mid_channel,), jnp.float32,
                                  -scale1, scale1),
        "g1": 1.0 + 0.1 * jax.random.normal(ks[2], (mid_channel,), jnp.float32),
        "b1": 0.1 * jax.random.normal(ks[3], (mid_channel,), jnp.float32),
        "w2": jax.random.uniform(ks[4], (3, 3, 3, mid_channel, out_channel),
                                 jnp.float32, -scale2, scale2),
        "cb2": jax.random.uniform(ks[5], (out_channel,), jnp.float32,
                                  -scale2, scale2),
        "g2": 1.0 + 0.1 * jax.random.normal(ks[6], (out_channel,), jnp.float32),
        "b2": 0.1 * jax.random.normal(ks[7], (out_channel,), jnp.float32),
    }


if __name__ == "__main__":
    key = jax.random.PRNGKey(0)
    k_x, k_p = jax.random.split(key)

    # small shapes: batch=2, in_channel=4, mid=8, out=8, spatial D=H=W=8 (NCDHW)
    N, Cin, Cmid, Cout, D, H, W = 2, 4, 8, 8, 8, 8, 8
    x = jax.random.normal(k_x, (N, Cin, D, H, W), jnp.float32)
    params = init_params(k_p, Cin, Cmid, Cout)

    # Default path: bf16 MXU operands and bf16 stored intermediates, f32
    # accumulation / BN statistics.  Tolerance reflects bf16 storage of the
    # pre-BN intermediates (the reference applies BN to the unrounded f32
    # conv output before casting).
    fwd = jax.jit(double_convolution)
    out = jax.block_until_ready(fwd(x, params))
    ref = jax.block_until_ready(double_convolution_reference(x, params))
    assert out.shape == (N, Cout, D, H, W), out.shape
    assert out.dtype == jnp.float32, out.dtype
    assert jnp.allclose(out, ref, atol=2e-2, rtol=2e-2), \
        float(jnp.max(jnp.abs(out - ref)))

    # Strict-parity path: full float32 (matches PyTorch f32 module numerics).
    fwd32 = jax.jit(functools.partial(double_convolution,
                                      matmul_dtype=jnp.float32))
    out32 = jax.block_until_ready(fwd32(x, params))
    ref32 = jax.block_until_ready(
        double_convolution_reference(x, params, matmul_dtype=jnp.float32))
    assert jnp.allclose(out32, ref32, atol=2e-3, rtol=2e-3), \
        float(jnp.max(jnp.abs(out32 - ref32)))

    print("KERNEL_OK")
</pallas_src>

<mosaic_0001>
module attributes {stable_mosaic.version = 11 : i64} {
  func.func @kernel(%arg0: i32, %arg1: i32, %arg2: i32, %arg3: memref<1x1x8x8x4xbf16, #tpu.memory_space<vmem>>, %arg4: memref<3x36x8xbf16, #tpu.memory_space<vmem>>, %arg5: memref<1x1x8x8x8xbf16, #tpu.memory_space<vmem>>, %arg6: memref<1x1x2x8xf32, #tpu.memory_space<vmem>>, %arg7: memref<64x8xf32, #tpu.memory_space<vmem>>) attributes {dimension_semantics = [#tpu.dimension_semantics<parallel>, #tpu.dimension_semantics<parallel>, #tpu.dimension_semantics<arbitrary>], iteration_bounds = array<i64: 2, 8, 3>, scalar_prefetch = 0 : i64, scratch_operands = 1 : i64, tpu.core_type = #tpu.core_type<tc>, window_params = [{transform_indices = @transform_0, window_bounds = array<i64: 1, 1, 8, 8, 4>}, {pipeline_mode = #tpu.pipeline_mode<synchronous>, transform_indices = @transform_1, window_bounds = array<i64: 3, 36, 8>}, {transform_indices = @transform_2, window_bounds = array<i64: 1, 1, 8, 8, 8>}, {transform_indices = @transform_3, window_bounds = array<i64: 1, 1, 2, 8>}]} {
    %c0_i32 = arith.constant 0 : i32
    %0 = arith.cmpi eq, %arg2, %c0_i32 : i32
    %1 = arith.extui %0 : i1 to i32
    %c0_i32_0 = arith.constant 0 : i32
    %2 = arith.cmpi ne, %1, %c0_i32_0 : i32
    scf.if %2 {
      %cst = arith.constant 0.000000e+00 : f32
      %13 = vector.broadcast %cst : f32 to vector<64x8xf32>
      %c0 = arith.constant 0 : index
      %c0_4 = arith.constant 0 : index
      %14 = vector.load %arg7[%c0, %c0_4] : memref<64x8xf32, #tpu.memory_space<vmem>>, vector<64x8xf32>
      tpu.vector_store %arg7[%c0, %c0_4], %13 {strides = array<i32>} : memref<64x8xf32, #tpu.memory_space<vmem>>, vector<64x8xf32>,
    } else {
    }
    %3 = arith.addi %arg1, %arg2 : i32
    %c1_i32 = arith.constant 1 : i32
    %4 = arith.subi %3, %c1_i32 : i32
    %c0_i32_1 = arith.constant 0 : i32
    %5 = arith.cmpi sge, %4, %c0_i32_1 : i32
    %c8_i32 = arith.constant 8 : i32
    %6 = arith.cmpi slt, %4, %c8_i32 : i32
    %7 = arith.andi %5, %6 : i1
    %8 = arith.extui %7 : i1 to i32
    %c0_i32_2 = arith.constant 0 : i32
    %9 = arith.cmpi ne, %8, %c0_i32_2 : i32
    scf.if %9 {
      %c0 = arith.constant 0 : index
      %c0_4 = arith.constant 0 : index
      %c0_5 = arith.constant 0 : index
      %c0_6 = arith.constant 0 : index
      %c0_7 = arith.constant 0 : index
      %13 = vector.load %arg3[%c0, %c0_4, %c0_5, %c0_6, %c0_7] : memref<1x1x8x8x4xbf16, #tpu.memory_space<vmem>>, vector<1x1x8x8x4xbf16>
      %14 = vector.shape_cast %13 : vector<1x1x8x8x4xbf16> to vector<8x8x4xbf16>
      %cst = arith.constant 0.000000e+00 : bf16
      %15 = vector.broadcast %cst : bf16 to vector<8x1x4xbf16>
      %cst_8 = arith.constant 0.000000e+00 : bf16
      %16 = vector.broadcast %cst_8 : bf16 to vector<1x10x4xbf16>
      %17 = tpu.concatenate %15, %14, %15 in 1 : vector<8x1x4xbf16>, vector<8x8x4xbf16>, vector<8x1x4xbf16> -> vector<8x10x4xbf16>
      %18 = tpu.concatenate %16, %17, %16 in 0 : vector<1x10x4xbf16>, vector<8x10x4xbf16>, vector<1x10x4xbf16> -> vector<10x10x4xbf16>
      %19 = vector.extract_strided_slice %18 {offsets = [0, 0, 0], sizes = [8, 8, 4], strides = [1, 1, 1]} : vector<10x10x4xbf16> to vector<8x8x4xbf16>
      %20 = vector.shape_cast %19 : vector<8x8x4xbf16> to vector<64x4xbf16>
      %21 = vector.extract_strided_slice %18 {offsets = [0, 1, 0], sizes = [8, 8, 4], strides = [1, 1, 1]} : vector<10x10x4xbf16> to vector<8x8x4xbf16>
      %22 = vector.shape_cast %21 : vector<8x8x4xbf16> to vector<64x4xbf16>
      %23 = vector.extract_strided_slice %18 {offsets = [0, 2, 0], sizes = [8, 8, 4], strides = [1, 1, 1]} : vector<10x10x4xbf16> to vector<8x8x4xbf16>
      %24 = vector.shape_cast %23 : vector<8x8x4xbf16> to vector<64x4xbf16>
      %25 = vector.extract_strided_slice %18 {offsets = [1, 0, 0], sizes = [8, 8, 4], strides = [1, 1, 1]} : vector<10x10x4xbf16> to vector<8x8x4xbf16>
      %26 = vector.shape_cast %25 : vector<8x8x4xbf16> to vector<64x4xbf16>
      %27 = vector.extract_strided_slice %18 {offsets = [1, 1, 0], sizes = [8, 8, 4], strides = [1, 1, 1]} : vector<10x10x4xbf16> to vector<8x8x4xbf16>
      %28 = vector.shape_cast %27 : vector<8x8x4xbf16> to vector<64x4xbf16>
      %29 = vector.extract_strided_slice %18 {offsets = [1, 2, 0], sizes = [8, 8, 4], strides = [1, 1, 1]} : vector<10x10x4xbf16> to vector<8x8x4xbf16>
      %30 = vector.shape_cast %29 : vector<8x8x4xbf16> to vector<64x4xbf16>
      %31 = vector.extract_strided_slice %18 {offsets = [2, 0, 0], sizes = [8, 8, 4], strides = [1, 1, 1]} : vector<10x10x4xbf16> to vector<8x8x4xbf16>
      %32 = vector.shape_cast %31 : vector<8x8x4xbf16> to vector<64x4xbf16>
      %33 = vector.extract_strided_slice %18 {offsets = [2, 1, 0], sizes = [8, 8, 4], strides = [1, 1, 1]} : vector<10x10x4xbf16> to vector<8x8x4xbf16>
      %34 = vector.shape_cast %33 : vector<8x8x4xbf16> to vector<64x4xbf16>
      %35 = vector.extract_strided_slice %18 {offsets = [2, 2, 0], sizes = [8, 8, 4], strides = [1, 1, 1]} : vector<10x10x4xbf16> to vector<8x8x4xbf16>
      %36 = vector.shape_cast %35 : vector<8x8x4xbf16> to vector<64x4xbf16>
      %37 = tpu.concatenate %20, %22, %24, %26, %28, %30, %32, %34, %36 in 1 : vector<64x4xbf16>, vector<64x4xbf16>, vector<64x4xbf16>, vector<64x4xbf16>, vector<64x4xbf16>, vector<64x4xbf16>, vector<64x4xbf16>, vector<64x4xbf16>, vector<64x4xbf16> -> vector<64x36xbf16>
      %c0_9 = arith.constant 0 : index
      %c0_10 = arith.constant 0 : index
      %38 = vector.load %arg7[%c0_9, %c0_10] : memref<64x8xf32, #tpu.memory_space<vmem>>, vector<64x8xf32>
      %39 = arith.index_cast %arg2 : i32 to index
      %c0_11 = arith.constant 0 : index
      %c0_12 = arith.constant 0 : index
      %40 = vector.load %arg4[%39, %c0_11, %c0_12] : memref<3x36x8xbf16, #tpu.memory_space<vmem>>, vector<1x36x8xbf16>
      %41 = vector.shape_cast %40 : vector<1x36x8xbf16> to vector<36x8xbf16>
      %cst_13 = arith.constant dense<0.000000e+00> : vector<64x8xf32>
      %42 = tpu.matmul %37, %41, %cst_13 {dimension_numbers = #tpu.dot_dimension_numbers<[1], [0], [0], [1], [0, 0, 1, 1], [], []>} : vector<64x36xbf16>, vector<36x8xbf16>, vector<64x8xf32> -> vector<64x8xf32>
      %43 = arith.addf %38, %42 : vector<64x8xf32>
      %c0_14 = arith.constant 0 : index
      %c0_15 = arith.constant 0 : index
      %44 = vector.load %arg7[%c0_14, %c0_15] : memref<64x8xf32, #tpu.memory_space<vmem>>, vector<64x8xf32>
      tpu.vector_store %arg7[%c0_14, %c0_15], %43 {strides = array<i32>} : memref<64x8xf32, #tpu.memory_space<vmem>>, vector<64x8xf32>,
    } else {
    }
    %c2_i32 = arith.constant 2 : i32
    %10 = arith.cmpi eq, %arg2, %c2_i32 : i32
    %11 = arith.extui %10 : i1 to i32
    %c0_i32_3 = arith.constant 0 : i32
    %12 = arith.cmpi ne, %11, %c0_i32_3 : i32
    scf.if %12 {
      %c0 = arith.constant 0 : index
      %c0_4 = arith.constant 0 : index
      %13 = vector.load %arg7[%c0, %c0_4] : memref<64x8xf32, #tpu.memory_space<vmem>>, vector<64x8xf32>
      %14 = vector.shape_cast %13 : vector<64x8xf32> to vector<8x8x8xf32>
      %15 = arith.truncf %14 : vector<8x8x8xf32> to vector<8x8x8xbf16>
      %c0_5 = arith.constant 0 : index
      %c0_6 = arith.constant 0 : index
      %c0_7 = arith.constant 0 : index
      %c0_8 = arith.constant 0 : index
      %c0_9 = arith.constant 0 : index
      %16 = vector.load %arg5[%c0_5, %c0_6, %c0_7, %c0_8, %c0_9] : memref<1x1x8x8x8xbf16, #tpu.memory_space<vmem>>, vector<1x1x8x8x8xbf16>
      %17 = vector.shape_cast %16 : vector<1x1x8x8x8xbf16> to vector<8x8x8xbf16>
      %18 = vector.shape_cast %15 : vector<8x8x8xbf16> to vector<1x1x8x8x8xbf16>
      tpu.vector_store %arg5[%c0_5, %c0_6, %c0_7, %c0_8, %c0_9], %18 {strides = array<i32>} : memref<1x1x8x8x8xbf16, #tpu.memory_space<vmem>>, vector<1x1x8x8x8xbf16>,
      %cst = arith.constant dense<0.000000e+00> : vector<8xf32>
      %19 = vector.multi_reduction <add>, %13, %cst [0] : vector<64x8xf32> to vector<8xf32>
      %20 = vector.shape_cast %19 : vector<8xf32> to vector<1x8xf32>
      %21 = arith.mulf %13, %13 : vector<64x8xf32>
      %cst_10 = arith.constant dense<0.000000e+00> : vector<8xf32>
      %22 = vector.multi_reduction <add>, %21, %cst_10 [0] : vector<64x8xf32> to vector<8xf32>
      %23 = vector.shape_cast %22 : vector<8xf32> to vector<1x8xf32>
      %24 = tpu.concatenate %20, %23 in 0 : vector<1x8xf32>, vector<1x8xf32> -> vector<2x8xf32>
      %c0_11 = arith.constant 0 : index
      %c0_12 = arith.constant 0 : index
      %c0_13 = arith.constant 0 : index
      %c0_14 = arith.constant 0 : index
      %25 = vector.load %arg6[%c0_11, %c0_12, %c0_13, %c0_14] : memref<1x1x2x8xf32, #tpu.memory_space<vmem>>, vector<1x1x2x8xf32>
      %26 = vector.shape_cast %25 : vector<1x1x2x8xf32> to vector<2x8xf32>
      %27 = vector.shape_cast %24 : vector<2x8xf32> to vector<1x1x2x8xf32>
      tpu.vector_store %arg6[%c0_11, %c0_12, %c0_13, %c0_14], %27 {strides = array<i32>} : memref<1x1x2x8xf32, #tpu.memory_space<vmem>>, vector<1x1x2x8xf32>,
    } else {
    }
    return
  }
  func.func @transform_0(%arg0: i32, %arg1: i32, %arg2: i32) -> (i32, i32, i32, i32, i32) {
    %0 = arith.addi %arg1, %arg2 : i32
    %c1_i32 = arith.constant 1 : i32
    %1 = arith.subi %0, %c1_i32 : i32
    %c7_i32 = arith.constant 7 : i32
    %2 = arith.minsi %1, %c7_i32 : i32
    %c0_i32 = arith.constant 0 : i32
    %3 = arith.maxsi %2, %c0_i32 : i32
    %c0_i32_0 = arith.constant 0 : i32
    %c0_i32_1 = arith.constant 0 : i32
    %c0_i32_2 = arith.constant 0 : i32
    %c0_i32_3 = arith.constant 0 : i32
    return %arg0, %3, %c0_i32_0, %c0_i32_1, %c0_i32_2 : i32, i32, i32, i32, i32
  }
  func.func @transform_1(%arg0: i32, %arg1: i32, %arg2: i32) -> (i32, i32, i32) {
    %c0_i32 = arith.constant 0 : i32
    %c0_i32_0 = arith.constant 0 : i32
    %c0_i32_1 = arith.constant 0 : i32
    %c0_i32_2 = arith.constant 0 : i32
    return %c0_i32, %c0_i32_0, %c0_i32_1 : i32, i32, i32
  }
  func.func @transform_2(%arg0: i32, %arg1: i32, %arg2: i32) -> (i32, i32, i32, i32, i32) {
    %c0_i32 = arith.constant 0 : i32
    %c0_i32_0 = arith.constant 0 : i32
    %c0_i32_1 = arith.constant 0 : i32
    %c0_i32_2 = arith.constant 0 : i32
    return %arg0, %arg1, %c0_i32, %c0_i32_0, %c0_i32_1 : i32, i32, i32, i32, i32
  }
  func.func @transform_3(%arg0: i32, %arg1: i32, %arg2: i32) -> (i32, i32, i32, i32) {
    %c0_i32 = arith.constant 0 : i32
    %c0_i32_0 = arith.constant 0 : i32
    %c0_i32_1 = arith.constant 0 : i32
    return %arg0, %arg1, %c0_i32, %c0_i32_0 : i32, i32, i32, i32
  }
}

module attributes {stable_mosaic.version = 11 : i64} {
  func.func @kernel(%arg0: i32, %arg1: i32, %arg2: memref<1x1x8x8x8xbf16, #tpu.memory_space<vmem>>, %arg3: memref<1x8xf32, #tpu.memory_space<vmem>>, %arg4: memref<1x8xf32, #tpu.memory_space<vmem>>, %arg5: memref<1x1x8x8x8xf32, #tpu.memory_space<vmem>>) attributes {dimension_semantics = [#tpu.dimension_semantics<parallel>, #tpu.dimension_semantics<parallel>], iteration_bounds = array<i64: 2, 8>, scalar_prefetch = 0 : i64, scratch_operands = 0 : i64, tpu.core_type = #tpu.core_type<tc>, window_params = [{transform_indices = @transform_0, window_bounds = array<i64: 1, 1, 8, 8, 8>}, {pipeline_mode = #tpu.pipeline_mode<synchronous>, transform_indices = @transform_1, window_bounds = array<i64: 1, 8>}, {pipeline_mode = #tpu.pipeline_mode<synchronous>, transform_indices = @transform_2, window_bounds = array<i64: 1, 8>}, {transform_indices = @transform_3, window_bounds = array<i64: 1, 1, 8, 8, 8>}]} {
    %c0 = arith.constant 0 : index
    %c0_0 = arith.constant 0 : index
    %c0_1 = arith.constant 0 : index
    %c0_2 = arith.constant 0 : index
    %c0_3 = arith.constant 0 : index
    %0 = vector.load %arg2[%c0, %c0_0, %c0_1, %c0_2, %c0_3] : memref<1x1x8x8x8xbf16, #tpu.memory_space<vmem>>, vector<1x1x8x8x8xbf16>
    %1 = vector.shape_cast %0 : vector<1x1x8x8x8xbf16> to vector<8x8x8xbf16>
    %2 = arith.extf %1 : vector<8x8x8xbf16> to vector<8x8x8xf32>
    %c0_4 = arith.constant 0 : index
    %c0_5 = arith.constant 0 : index
    %3 = vector.load %arg3[%c0_4, %c0_5] : memref<1x8xf32, #tpu.memory_space<vmem>>, vector<1x8xf32>
    %4 = vector.shape_cast %3 : vector<1x8xf32> to vector<1x1x8xf32>
    %5 = vector.broadcast %4 : vector<1x1x8xf32> to vector<8x8x8xf32>
    %6 = arith.mulf %2, %5 : vector<8x8x8xf32>
    %c0_6 = arith.constant 0 : index
    %c0_7 = arith.constant 0 : index
    %7 = vector.load %arg4[%c0_6, %c0_7] : memref<1x8xf32, #tpu.memory_space<vmem>>, vector<1x8xf32>
    %8 = vector.shape_cast %7 : vector<1x8xf32> to vector<1x1x8xf32>
    %9 = vector.broadcast %8 : vector<1x1x8xf32> to vector<8x8x8xf32>
    %10 = arith.addf %6, %9 : vector<8x8x8xf32>
    %cst = arith.constant 0.000000e+00 : f32
    %11 = vector.broadcast %cst : f32 to vector<8x8x8xf32>
    %12 = arith.maximumf %10, %11 : vector<8x8x8xf32>
    %c0_8 = arith.constant 0 : index
    %c0_9 = arith.constant 0 : index
    %c0_10 = arith.constant 0 : index
    %c0_11 = arith.constant 0 : index
    %c0_12 = arith.constant 0 : index
    %13 = vector.load %arg5[%c0_8, %c0_9, %c0_10, %c0_11, %c0_12] : memref<1x1x8x8x8xf32, #tpu.memory_space<vmem>>, vector<1x1x8x8x8xf32>
    %14 = vector.shape_cast %13 : vector<1x1x8x8x8xf32> to vector<8x8x8xf32>
    %15 = vector.shape_cast %12 : vector<8x8x8xf32> to vector<1x1x8x8x8xf32>
    tpu.vector_store %arg5[%c0_8, %c0_9, %c0_10, %c0_11, %c0_12], %15 {strides = array<i32>} : memref<1x1x8x8x8xf32, #tpu.memory_space<vmem>>, vector<1x1x8x8x8xf32>,
    return
  }
  func.func @transform_0(%arg0: i32, %arg1: i32) -> (i32, i32, i32, i32, i32) {
    %c0_i32 = arith.constant 0 : i32
    %c0_i32_0 = arith.constant 0 : i32
    %c0_i32_1 = arith.constant 0 : i32
    %c0_i32_2 = arith.constant 0 : i32
    return %arg0, %arg1, %c0_i32, %c0_i32_0, %c0_i32_1 : i32, i32, i32, i32, i32
  }
  func.func @transform_1(%arg0: i32, %arg1: i32) -> (i32, i32) {
    %c0_i32 = arith.constant 0 : i32
    %c0_i32_0 = arith.constant 0 : i32
    %c0_i32_1 = arith.constant 0 : i32
    return %c0_i32, %c0_i32_0 : i32, i32
  }
  func.func @transform_2(%arg0: i32, %arg1: i32) -> (i32, i32) {
    %c0_i32 = arith.constant 0 : i32
    %c0_i32_0 = arith.constant 0 : i32
    %c0_i32_1 = arith.constant 0 : i32
    return %c0_i32, %c0_i32_0 : i32, i32
  }
  func.func @transform_3(%arg0: i32, %arg1: i32) -> (i32, i32, i32, i32, i32) {
    %c0_i32 = arith.constant 0 : i32
    %c0_i32_0 = arith.constant 0 : i32
    %c0_i32_1 = arith.constant 0 : i32
    %c0_i32_2 = arith.constant 0 : i32
    return %arg0, %arg1, %c0_i32, %c0_i32_0, %c0_i32_1 : i32, i32, i32, i32, i32
  }
}

module attributes {stable_mosaic.version = 11 : i64} {
  func.func @kernel(%arg0: i32, %arg1: i32, %arg2: i32, %arg3: memref<1x1x8x8x8xbf16, #tpu.memory_space<vmem>>, %arg4: memref<3x72x8xbf16, #tpu.memory_space<vmem>>, %arg5: memref<1x8xf32, #tpu.memory_space<vmem>>, %arg6: memref<1x8xf32, #tpu.memory_space<vmem>>, %arg7: memref<1x1x8x8x8xbf16, #tpu.memory_space<vmem>>, %arg8: memref<1x1x2x8xf32, #tpu.memory_space<vmem>>, %arg9: memref<64x8xf32, #tpu.memory_space<vmem>>) attributes {dimension_semantics = [#tpu.dimension_semantics<parallel>, #tpu.dimension_semantics<parallel>, #tpu.dimension_semantics<arbitrary>], iteration_bounds = array<i64: 2, 8, 3>, scalar_prefetch = 0 : i64, scratch_operands = 1 : i64, tpu.core_type = #tpu.core_type<tc>, window_params = [{transform_indices = @transform_0, window_bounds = array<i64: 1, 1, 8, 8, 8>}, {pipeline_mode = #tpu.pipeline_mode<synchronous>, transform_indices = @transform_1, window_bounds = array<i64: 3, 72, 8>}, {pipeline_mode = #tpu.pipeline_mode<synchronous>, transform_indices = @transform_2, window_bounds = array<i64: 1, 8>}, {pipeline_mode = #tpu.pipeline_mode<synchronous>, transform_indices = @transform_3, window_bounds = array<i64: 1, 8>}, {transform_indices = @transform_4, window_bounds = array<i64: 1, 1, 8, 8, 8>}, {transform_indices = @transform_5, window_bounds = array<i64: 1, 1, 2, 8>}]} {
    %c0_i32 = arith.constant 0 : i32
    %0 = arith.cmpi eq, %arg2, %c0_i32 : i32
    %1 = arith.extui %0 : i1 to i32
    %c0_i32_0 = arith.constant 0 : i32
    %2 = arith.cmpi ne, %1, %c0_i32_0 : i32
    scf.if %2 {
      %cst = arith.constant 0.000000e+00 : f32
      %13 = vector.broadcast %cst : f32 to vector<64x8xf32>
      %c0 = arith.constant 0 : index
      %c0_4 = arith.constant 0 : index
      %14 = vector.load %arg9[%c0, %c0_4] : memref<64x8xf32, #tpu.memory_space<vmem>>, vector<64x8xf32>
      tpu.vector_store %arg9[%c0, %c0_4], %13 {strides = array<i32>} : memref<64x8xf32, #tpu.memory_space<vmem>>, vector<64x8xf32>,
    } else {
    }
    %3 = arith.addi %arg1, %arg2 : i32
    %c1_i32 = arith.constant 1 : i32
    %4 = arith.subi %3, %c1_i32 : i32
    %c0_i32_1 = arith.constant 0 : i32
    %5 = arith.cmpi sge, %4, %c0_i32_1 : i32
    %c8_i32 = arith.constant 8 : i32
    %6 = arith.cmpi slt, %4, %c8_i32 : i32
    %7 = arith.andi %5, %6 : i1
    %8 = arith.extui %7 : i1 to i32
    %c0_i32_2 = arith.constant 0 : i32
    %9 = arith.cmpi ne, %8, %c0_i32_2 : i32
    scf.if %9 {
      %c0 = arith.constant 0 : index
      %c0_4 = arith.constant 0 : index
      %c0_5 = arith.constant 0 : index
      %c0_6 = arith.constant 0 : index
      %c0_7 = arith.constant 0 : index
      %13 = vector.load %arg3[%c0, %c0_4, %c0_5, %c0_6, %c0_7] : memref<1x1x8x8x8xbf16, #tpu.memory_space<vmem>>, vector<1x1x8x8x8xbf16>
      %14 = vector.shape_cast %13 : vector<1x1x8x8x8xbf16> to vector<8x8x8xbf16>
      %15 = arith.extf %14 : vector<8x8x8xbf16> to vector<8x8x8xf32>
      %c0_8 = arith.constant 0 : index
      %c0_9 = arith.constant 0 : index
      %16 = vector.load %arg5[%c0_8, %c0_9] : memref<1x8xf32, #tpu.memory_space<vmem>>, vector<1x8xf32>
      %17 = vector.shape_cast %16 : vector<1x8xf32> to vector<1x1x8xf32>
      %18 = vector.broadcast %17 : vector<1x1x8xf32> to vector<8x8x8xf32>
      %19 = arith.mulf %15, %18 : vector<8x8x8xf32>
      %c0_10 = arith.constant 0 : index
      %c0_11 = arith.constant 0 : index
      %20 = vector.load %arg6[%c0_10, %c0_11] : memref<1x8xf32, #tpu.memory_space<vmem>>, vector<1x8xf32>
      %21 = vector.shape_cast %20 : vector<1x8xf32> to vector<1x1x8xf32>
      %22 = vector.broadcast %21 : vector<1x1x8xf32> to vector<8x8x8xf32>
      %23 = arith.addf %19, %22 : vector<8x8x8xf32>
      %cst = arith.constant 0.000000e+00 : f32
      %24 = vector.broadcast %cst : f32 to vector<8x8x8xf32>
      %25 = arith.maximumf %23, %24 : vector<8x8x8xf32>
      %26 = arith.truncf %25 : vector<8x8x8xf32> to vector<8x8x8xbf16>
      %cst_12 = arith.constant 0.000000e+00 : bf16
      %27 = vector.broadcast %cst_12 : bf16 to vector<8x1x8xbf16>
      %cst_13 = arith.constant 0.000000e+00 : bf16
      %28 = vector.broadcast %cst_13 : bf16 to vector<1x10x8xbf16>
      %29 = tpu.concatenate %27, %26, %27 in 1 : vector<8x1x8xbf16>, vector<8x8x8xbf16>, vector<8x1x8xbf16> -> vector<8x10x8xbf16>
      %30 = tpu.concatenate %28, %29, %28 in 0 : vector<1x10x8xbf16>, vector<8x10x8xbf16>, vector<1x10x8xbf16> -> vector<10x10x8xbf16>
      %31 = vector.extract_strided_slice %30 {offsets = [0, 0, 0], sizes = [8, 8, 8], strides = [1, 1, 1]} : vector<10x10x8xbf16> to vector<8x8x8xbf16>
      %32 = vector.shape_cast %31 : vector<8x8x8xbf16> to vector<64x8xbf16>
      %33 = vector.extract_strided_slice %30 {offsets = [0, 1, 0], sizes = [8, 8, 8], strides = [1, 1, 1]} : vector<10x10x8xbf16> to vector<8x8x8xbf16>
      %34 = vector.shape_cast %33 : vector<8x8x8xbf16> to vector<64x8xbf16>
      %35 = vector.extract_strided_slice %30 {offsets = [0, 2, 0], sizes = [8, 8, 8], strides = [1, 1, 1]} : vector<10x10x8xbf16> to vector<8x8x8xbf16>
      %36 = vector.shape_cast %35 : vector<8x8x8xbf16> to vector<64x8xbf16>
      %37 = vector.extract_strided_slice %30 {offsets = [1, 0, 0], sizes = [8, 8, 8], strides = [1, 1, 1]} : vector<10x10x8xbf16> to vector<8x8x8xbf16>
      %38 = vector.shape_cast %37 : vector<8x8x8xbf16> to vector<64x8xbf16>
      %39 = vector.extract_strided_slice %30 {offsets = [1, 1, 0], sizes = [8, 8, 8], strides = [1, 1, 1]} : vector<10x10x8xbf16> to vector<8x8x8xbf16>
      %40 = vector.shape_cast %39 : vector<8x8x8xbf16> to vector<64x8xbf16>
      %41 = vector.extract_strided_slice %30 {offsets = [1, 2, 0], sizes = [8, 8, 8], strides = [1, 1, 1]} : vector<10x10x8xbf16> to vector<8x8x8xbf16>
      %42 = vector.shape_cast %41 : vector<8x8x8xbf16> to vector<64x8xbf16>
      %43 = vector.extract_strided_slice %30 {offsets = [2, 0, 0], sizes = [8, 8, 8], strides = [1, 1, 1]} : vector<10x10x8xbf16> to vector<8x8x8xbf16>
      %44 = vector.shape_cast %43 : vector<8x8x8xbf16> to vector<64x8xbf16>
      %45 = vector.extract_strided_slice %30 {offsets = [2, 1, 0], sizes = [8, 8, 8], strides = [1, 1, 1]} : vector<10x10x8xbf16> to vector<8x8x8xbf16>
      %46 = vector.shape_cast %45 : vector<8x8x8xbf16> to vector<64x8xbf16>
      %47 = vector.extract_strided_slice %30 {offsets = [2, 2, 0], sizes = [8, 8, 8], strides = [1, 1, 1]} : vector<10x10x8xbf16> to vector<8x8x8xbf16>
      %48 = vector.shape_cast %47 : vector<8x8x8xbf16> to vector<64x8xbf16>
      %49 = tpu.concatenate %32, %34, %36, %38, %40, %42, %44, %46, %48 in 1 : vector<64x8xbf16>, vector<64x8xbf16>, vector<64x8xbf16>, vector<64x8xbf16>, vector<64x8xbf16>, vector<64x8xbf16>, vector<64x8xbf16>, vector<64x8xbf16>, vector<64x8xbf16> -> vector<64x72xbf16>
      %c0_14 = arith.constant 0 : index
      %c0_15 = arith.constant 0 : index
      %50 = vector.load %arg9[%c0_14, %c0_15] : memref<64x8xf32, #tpu.memory_space<vmem>>, vector<64x8xf32>
      %51 = arith.index_cast %arg2 : i32 to index
      %c0_16 = arith.constant 0 : index
      %c0_17 = arith.constant 0 : index
      %52 = vector.load %arg4[%51, %c0_16, %c0_17] : memref<3x72x8xbf16, #tpu.memory_space<vmem>>, vector<1x72x8xbf16>
      %53 = vector.shape_cast %52 : vector<1x72x8xbf16> to vector<72x8xbf16>
      %cst_18 = arith.constant dense<0.000000e+00> : vector<64x8xf32>
      %54 = tpu.matmul %49, %53, %cst_18 {dimension_numbers = #tpu.dot_dimension_numbers<[1], [0], [0], [1], [0, 0, 1, 1], [], []>} : vector<64x72xbf16>, vector<72x8xbf16>, vector<64x8xf32> -> vector<64x8xf32>
      %55 = arith.addf %50, %54 : vector<64x8xf32>
      %c0_19 = arith.constant 0 : index
      %c0_20 = arith.constant 0 : index
      %56 = vector.load %arg9[%c0_19, %c0_20] : memref<64x8xf32, #tpu.memory_space<vmem>>, vector<64x8xf32>
      tpu.vector_store %arg9[%c0_19, %c0_20], %55 {strides = array<i32>} : memref<64x8xf32, #tpu.memory_space<vmem>>, vector<64x8xf32>,
    } else {
    }
    %c2_i32 = arith.constant 2 : i32
    %10 = arith.cmpi eq, %arg2, %c2_i32 : i32
    %11 = arith.extui %10 : i1 to i32
    %c0_i32_3 = arith.constant 0 : i32
    %12 = arith.cmpi ne, %11, %c0_i32_3 : i32
    scf.if %12 {
      %c0 = arith.constant 0 : index
      %c0_4 = arith.constant 0 : index
      %13 = vector.load %arg9[%c0, %c0_4] : memref<64x8xf32, #tpu.memory_space<vmem>>, vector<64x8xf32>
      %14 = vector.shape_cast %13 : vector<64x8xf32> to vector<8x8x8xf32>
      %15 = arith.truncf %14 : vector<8x8x8xf32> to vector<8x8x8xbf16>
      %c0_5 = arith.constant 0 : index
      %c0_6 = arith.constant 0 : index
      %c0_7 = arith.constant 0 : index
      %c0_8 = arith.constant 0 : index
      %c0_9 = arith.constant 0 : index
      %16 = vector.load %arg7[%c0_5, %c0_6, %c0_7, %c0_8, %c0_9] : memref<1x1x8x8x8xbf16, #tpu.memory_space<vmem>>, vector<1x1x8x8x8xbf16>
      %17 = vector.shape_cast %16 : vector<1x1x8x8x8xbf16> to vector<8x8x8xbf16>
      %18 = vector.shape_cast %15 : vector<8x8x8xbf16> to vector<1x1x8x8x8xbf16>
      tpu.vector_store %arg7[%c0_5, %c0_6, %c0_7, %c0_8, %c0_9], %18 {strides = array<i32>} : memref<1x1x8x8x8xbf16, #tpu.memory_space<vmem>>, vector<1x1x8x8x8xbf16>,
      %cst = arith.constant dense<0.000000e+00> : vector<8xf32>
      %19 = vector.multi_reduction <add>, %13, %cst [0] : vector<64x8xf32> to vector<8xf32>
      %20 = vector.shape_cast %19 : vector<8xf32> to vector<1x8xf32>
      %21 = arith.mulf %13, %13 : vector<64x8xf32>
      %cst_10 = arith.constant dense<0.000000e+00> : vector<8xf32>
      %22 = vector.multi_reduction <add>, %21, %cst_10 [0] : vector<64x8xf32> to vector<8xf32>
      %23 = vector.shape_cast %22 : vector<8xf32> to vector<1x8xf32>
      %24 = tpu.concatenate %20, %23 in 0 : vector<1x8xf32>, vector<1x8xf32> -> vector<2x8xf32>
      %c0_11 = arith.constant 0 : index
      %c0_12 = arith.constant 0 : index
      %c0_13 = arith.constant 0 : index
      %c0_14 = arith.constant 0 : index
      %25 = vector.load %arg8[%c0_11, %c0_12, %c0_13, %c0_14] : memref<1x1x2x8xf32, #tpu.memory_space<vmem>>, vector<1x1x2x8xf32>
      %26 = vector.shape_cast %25 : vector<1x1x2x8xf32> to vector<2x8xf32>
      %27 = vector.shape_cast %24 : vector<2x8xf32> to vector<1x1x2x8xf32>
      tpu.vector_store %arg8[%c0_11, %c0_12, %c0_13, %c0_14], %27 {strides = array<i32>} : memref<1x1x2x8xf32, #tpu.memory_space<vmem>>, vector<1x1x2x8xf32>,
    } else {
    }
    return
  }
  func.func @transform_0(%arg0: i32, %arg1: i32, %arg2: i32) -> (i32, i32, i32, i32, i32) {
    %0 = arith.addi %arg1, %arg2 : i32
    %c1_i32 = arith.constant 1 : i32
    %1 = arith.subi %0, %c1_i32 : i32
    %c7_i32 = arith.constant 7 : i32
    %2 = arith.minsi %1, %c7_i32 : i32
    %c0_i32 = arith.constant 0 : i32
    %3 = arith.maxsi %2, %c0_i32 : i32
    %c0_i32_0 = arith.constant 0 : i32
    %c0_i32_1 = arith.constant 0 : i32
    %c0_i32_2 = arith.constant 0 : i32
    %c0_i32_3 = arith.constant 0 : i32
    return %arg0, %3, %c0_i32_0, %c0_i32_1, %c0_i32_2 : i32, i32, i32, i32, i32
  }
  func.func @transform_1(%arg0: i32, %arg1: i32, %arg2: i32) -> (i32, i32, i32) {
    %c0_i32 = arith.constant 0 : i32
    %c0_i32_0 = arith.constant 0 : i32
    %c0_i32_1 = arith.constant 0 : i32
    %c0_i32_2 = arith.constant 0 : i32
    return %c0_i32, %c0_i32_0, %c0_i32_1 : i32, i32, i32
  }
  func.func @transform_2(%arg0: i32, %arg1: i32, %arg2: i32) -> (i32, i32) {
    %c0_i32 = arith.constant 0 : i32
    %c0_i32_0 = arith.constant 0 : i32
    %c0_i32_1 = arith.constant 0 : i32
    return %c0_i32, %c0_i32_0 : i32, i32
  }
  func.func @transform_3(%arg0: i32, %arg1: i32, %arg2: i32) -> (i32, i32) {
    %c0_i32 = arith.constant 0 : i32
    %c0_i32_0 = arith.constant 0 : i32
    %c0_i32_1 = arith.constant 0 : i32
    return %c0_i32, %c0_i32_0 : i32, i32
  }
  func.func @transform_4(%arg0: i32, %arg1: i32, %arg2: i32) -> (i32, i32, i32, i32, i32) {
    %c0_i32 = arith.constant 0 : i32
    %c0_i32_0 = arith.constant 0 : i32
    %c0_i32_1 = arith.constant 0 : i32
    %c0_i32_2 = arith.constant 0 : i32
    return %arg0, %arg1, %c0_i32, %c0_i32_0, %c0_i32_1 : i32, i32, i32, i32, i32
  }
  func.func @transform_5(%arg0: i32, %arg1: i32, %arg2: i32) -> (i32, i32, i32, i32) {
    %c0_i32 = arith.constant 0 : i32
    %c0_i32_0 = arith.constant 0 : i32
    %c0_i32_1 = arith.constant 0 : i32
    return %arg0, %arg1, %c0_i32, %c0_i32_0 : i32, i32, i32, i32
  }
}

</mosaic_0001>

<llo_original>
// kernel: double_convolution.5
$region0: #{double_convolution.5}
  #allocation0 [shape = 'u32[]', space=smem, size = 0x4, offset = 0x4, fixed_abs, tag = 'smem constant byte address 0x4 - core index']
  #allocation1 [shape = 'u32[144,128]{1,0:T(1,128)}', space=vmem, size = 0x12000, scoped, tag = 'internal scratch']
  %s0 = inlined_call_operand.vmem [shape: bf16[2,8,8,8,8], index: 0, kind: input, shape index: {}]
  %s1 = inlined_call_operand.vmem [shape: f32[1,8], index: 1, kind: input, shape index: {}]
  %s2 = inlined_call_operand.vmem [shape: f32[1,8], index: 2, kind: input, shape index: {}]
  %s3 = inlined_call_operand.vmem [shape: f32[2,8,8,8,8], index: 3, kind: output, shape index: {}]
  %s4 = sld [smem:[#allocation0]]
  $region45: #{double_convolution.5} parent=0
    _
  %s6 = ssub.s32 1, %s4
  %s7 = scalar_select 0, %s6, %s4
  loop: start=0, step=1, limit=18
  $region2: #{double_convolution.5} parent=0 // loop_pre_header
    _
  $region3: #{double_convolution.5} parent=0 // loop_header
    %s9 = sphi 0, %s13
    %p10 = scmp.ge.s32.totalorder %s9, 18
    %s16 = sphi 0, %s28
    %s17 = sphi 0, %s24
    %s18 = sphi 0, %s16
    %s19 = sphi 0, %s17
    %s20 = sphi 0, %s18
    %s21 = sphi 0, %s19
    %s33 = sphi 0, %s35
    %s36 = sphi 0, %s33
    %s37 = sphi 0, %s36
    %s53 = sphi 0, %s37
    %s57 = sphi 0, %s57
    %s59 = sphi 0, %s57
    %s60 = sphi 0, %s59
    %s74 = sphi 0, %s60
    %s78 = sphi 0, %s78
    %s80 = sphi 0, %s78
    %s81 = sphi 0, %s80
    %s95 = sphi 0, %s81
    %s103 = sphi 0, %s105
    %s106 = sphi 0, %s103
    %s107 = sphi 0, %s106
    %s123 = sphi 0, %s107
  $region4: #{double_convolution.5} parent=0 // loop_header_branch
    %12 = sbr.rel (%p10) target = $region8
  $region5: #{double_convolution.5} parent=0 // loop_body
    %s14 = ssub.s32 %s9, 1
    %s15 = ssub.s32 %s9, 2
    %s22 = sadd.s32 1, %s17
    %p23 = scmp.ge.s32.totalorder %s22, 8
    %s24 = scalar_select %p23, 0, %s22
    %s25 = sadd.s32 1, %s16
    %s26 = scalar_select %p23, %s25, %s16
    %p27 = scmp.ge.s32.totalorder %s26, 2
    %s28 = scalar_select %p27, 0, %s26
    %s29 = ssub.s32 %s16, %s28
    %s30 = ssub.s32 %s17, %s24
    %s31 = sor.u32 %s29, %s30
    %p32 = scmp.eq.s32.totalorder %s31, 0
    %s34 = sadd.s32 %s33, 1
    %s35 = scalar_select %p32, %s33, %s34
    %p38 = pneg %p32
    %p39 = scmp.eq.s32.totalorder %s9, 15
    %p40 = por %p38, %p39
    %p41 = scmp.ne.s32.totalorder %s33, %s36
    %p42 = scmp.eq.s32.totalorder %s9, 0
    %p43 = por %p41, %p42
    %p44 = scmp.ne.s32.totalorder %s33, %s36
    %p45 = scmp.eq.s32.totalorder %s14, 15
    %p46 = por %p44, %p45
    %p47 = scmp.ne.s32.totalorder %s36, %s37
    %p48 = scmp.eq.s32.totalorder %s14, 0
    %p49 = por %p47, %p48
    %p50 = scmp.ne.s32.totalorder %s36, %s37
    %p51 = scmp.eq.s32.totalorder %s15, 15
    %p52 = por %p50, %p51
    %p54 = scmp.ne.s32.totalorder %s37, %s53
    %p55 = scmp.eq.s32.totalorder %s15, 0
    %p56 = por %p54, %p55
    %s58 = sadd.s32 %s57, 1
    %p61 = scmp.eq.s32.totalorder %s9, 15
    %p62 = scmp.ne.s32.totalorder %s57, %s59
    %p63 = scmp.eq.s32.totalorder %s9, 0
    %p64 = por %p62, %p63
    %p65 = scmp.ne.s32.totalorder %s57, %s59
    %p66 = scmp.eq.s32.totalorder %s14, 15
    %p67 = por %p65, %p66
    %p68 = scmp.ne.s32.totalorder %s59, %s60
    %p69 = scmp.eq.s32.totalorder %s14, 0
    %p70 = por %p68, %p69
    %p71 = scmp.ne.s32.totalorder %s59, %s60
    %p72 = scmp.eq.s32.totalorder %s15, 15
    %p73 = por %p71, %p72
    %p75 = scmp.ne.s32.totalorder %s60, %s74
    %p76 = scmp.eq.s32.totalorder %s15, 0
    %p77 = por %p75, %p76
    %s79 = sadd.s32 %s78, 1
    %p82 = scmp.eq.s32.totalorder %s9, 15
    %p83 = scmp.ne.s32.totalorder %s78, %s80
    %p84 = scmp.eq.s32.totalorder %s9, 0
    %p85 = por %p83, %p84
    %p86 = scmp.ne.s32.totalorder %s78, %s80
    %p87 = scmp.eq.s32.totalorder %s14, 15
    %p88 = por %p86, %p87
    %p89 = scmp.ne.s32.totalorder %s80, %s81
    %p90 = scmp.eq.s32.totalorder %s14, 0
    %p91 = por %p89, %p90
    %p92 = scmp.ne.s32.totalorder %s80, %s81
    %p93 = scmp.eq.s32.totalorder %s15, 15
    %p94 = por %p92, %p93
    %p96 = scmp.ne.s32.totalorder %s81, %s95
    %p97 = scmp.eq.s32.totalorder %s15, 0
    %p98 = por %p96, %p97
    %s99 = ssub.s32 %s16, %s28
    %s100 = ssub.s32 %s17, %s24
    %s101 = sor.u32 %s99, %s100
    %p102 = scmp.eq.s32.totalorder %s101, 0
    %s104 = sadd.s32 %s103, 1
    %s105 = scalar_select %p102, %s103, %s104
    %p108 = pneg %p102
    %p109 = scmp.eq.s32.totalorder %s9, 15
    %p110 = por %p108, %p109
    %p111 = scmp.ne.s32.totalorder %s103, %s106
    %p112 = scmp.eq.s32.totalorder %s9, 0
    %p113 = por %p111, %p112
    %p114 = scmp.ne.s32.totalorder %s103, %s106
    %p115 = scmp.eq.s32.totalorder %s14, 15
    %p116 = por %p114, %p115
    %p117 = scmp.ne.s32.totalorder %s106, %s107
    %p118 = scmp.eq.s32.totalorder %s14, 0
    %p119 = por %p117, %p118
    %p120 = scmp.ne.s32.totalorder %s106, %s107
    %p121 = scmp.eq.s32.totalorder %s15, 15
    %p122 = por %p120, %p121
    %p124 = scmp.ne.s32.totalorder %s107, %s123
    %p125 = scmp.eq.s32.totalorder %s15, 0
    %p126 = por %p124, %p125
    %p127 = scmp.le.s32.totalorder 1, %s9
    %p128 = scmp.lt.s32.totalorder %s9, 17
    %p129 = pnand %p127, %p128
    %p130 = pneg %p129
    // Predicated region
    $region9: #{double_convolution.5} parent=5 // pred_check
      _
    $region10: #{double_convolution.5} parent=5 // pred_check_branch
      %132 = sbr.rel (%p129) target = $region12
    $region11: #{double_convolution.5} parent=5 // pred_region
      %s133 = ssub.s32 %s9, 1
      // Predicated region
      $region13: #{double_convolution.5} parent=11 // pred_check
        %p134 = pneg %p70
      $region14: #{double_convolution.5} parent=11 // pred_check_branch
        %136 = sbr.rel (%p134) target = $region16
      $region15: #{double_convolution.5} parent=11 // pred_region
        _
      $region16: #{double_convolution.5} parent=11 // pred_fallthru
        _
      // Predicated region
      $region17: #{double_convolution.5} parent=11 // pred_check
        %p137 = pneg %p91
      $region18: #{double_convolution.5} parent=11 // pred_check_branch
        %139 = sbr.rel (%p137) target = $region20
      $region19: #{double_convolution.5} parent=11 // pred_region
        _
      $region20: #{double_convolution.5} parent=11 // pred_fallthru
        _
    $region12: #{double_convolution.5} parent=5 // pred_fallthru
      _
    %p140 = scmp.lt.s32.totalorder %s9, 16
    // Predicated region
    $region21: #{double_convolution.5} parent=5 // pred_check
      %p141 = pneg %p140
    $region22: #{double_convolution.5} parent=5 // pred_check_branch
      %143 = sbr.rel (%p141) target = $region24
    $region23: #{double_convolution.5} parent=5 // pred_region
      // Predicated region
      $region25: #{double_convolution.5} parent=23 // pred_check
        %p144 = pneg %p43
      $region26: #{double_convolution.5} parent=23 // pred_check_branch
        %146 = sbr.rel (%p144) target = $region28
      $region27: #{double_convolution.5} parent=23 // pred_region
        %p147 = scmp.lt.s32.totalorder %s16, 1
        %s148 = scalar_select %p147, %s16, 1
        %p149 = scmp.lt.s32.totalorder %s17, 7
        %s150 = scalar_select %p149, %s17, 7
        %s151 = smul.addr %s150, 8
        %s152 = smul.addr %s148, 64
        %s153 = sadd.s32 %s151, %s152
        %s154 = smul.addr %s153, 4
        %s155 = scalar_lea.vmem %s0, %s154
      $region28: #{double_convolution.5} parent=23 // pred_fallthru
        _
    $region24: #{double_convolution.5} parent=5 // pred_fallthru
      _
    %p156 = scmp.le.s32.totalorder 1, %s9
    %p157 = scmp.lt.s32.totalorder %s9, 17
    %p158 = pnand %p156, %p157
    %p159 = pneg %p158
    // Predicated region
    $region29: #{double_convolution.5} parent=5 // pred_check
      _
    $region30: #{double_convolution.5} parent=5 // pred_check_branch
      %161 = sbr.rel (%p158) target = $region32
    $region31: #{double_convolution.5} parent=5 // pred_region
      %s162 = ssub.s32 %s9, 1
      %p163 = scmp.lt.s32.totalorder %s18, 1
      %s164 = scalar_select %p163, %s18, 1
      %p165 = scmp.lt.s32.totalorder %s19, 7
      %s166 = scalar_select %p165, %s19, 7
      %s167 = smul.addr %s166, 8
      %s168 = smul.addr %s164, 64
      %s169 = sadd.s32 %s167, %s168
      %s170 = smul.addr %s169, 4
      %s171 = scalar_lea.vmem %s0, %s170
      %p172 = pneg %p49
      %p173 = pneg %p46
      %p174 = pneg %p70
      %p175 = pneg %p67
      %p176 = pneg %p91
      %p177 = pneg %p88
      %p178 = pneg %p119
      %p179 = pneg %p116
      %p180 = scmp.lt.s32.totalorder %s18, 1
      %s181 = scalar_select %p180, %s18, 1
      %p182 = scmp.lt.s32.totalorder %s19, 7
      %s183 = scalar_select %p182, %s19, 7
      %s184 = smul.addr %s183, 8
      %s185 = smul.addr %s181, 64
      %s186 = sadd.s32 %s184, %s185
      %s187 = smul.addr %s186, 8
      %s188 = scalar_lea.vmem %s3, %s187
      %p189 = scmp.lt.s32.totalorder %s18, 1
      %s190 = scalar_select %p189, %s18, 1
      %p191 = scmp.lt.s32.totalorder %s19, 7
      %s192 = scalar_select %p191, %s19, 7
      %s193 = smul.addr %s192, 8
      %s194 = smul.addr %s190, 64
      %s195 = sadd.s32 %s193, %s194
      %s196 = smul.addr %s195, 4
      %s197 = scalar_lea.vmem %s0, %s196
      %p198 = scmp.lt.s32.totalorder %s18, 1
      %s199 = scalar_select %p198, %s18, 1
      %p200 = scmp.lt.s32.totalorder %s19, 7
      %s201 = scalar_select %p200, %s19, 7
      %s202 = smul.addr %s201, 8
      %s203 = smul.addr %s199, 64
      %s204 = sadd.s32 %s202, %s203
      %s205 = smul.addr %s204, 8
      %s206 = scalar_lea.vmem %s3, %s205
      %v207 = vld [vmem:[%s197] sm:$0xf]
      %v208 = vld [vmem:[%s197 + $0x4] sm:$0xf]
      %v209 = vld [vmem:[%s197 + $0x8] sm:$0xf]
      %v210 = vld [vmem:[%s197 + $0xc] sm:$0xf]
      %v211 = vld [vmem:[%s197 + $0x10] sm:$0xf]
      %v212 = vld [vmem:[%s197 + $0x14] sm:$0xf]
      %v213 = vld [vmem:[%s197 + $0x18] sm:$0xf]
      %v214 = vld [vmem:[%s197 + $0x1c] sm:$0xf]
      %v215 = vunpack.c.l.bf16 %v207
      %v216 = vunpack.c.l.bf16 %v208
      %v217 = vunpack.c.l.bf16 %v209
      %v218 = vunpack.c.l.bf16 %v210
      %v219 = vunpack.c.l.bf16 %v211
      %v220 = vunpack.c.l.bf16 %v212
      %v221 = vunpack.c.l.bf16 %v213
      %v222 = vunpack.c.l.bf16 %v214
      %v223 = vld [vmem:[%s1] sm:$0x1]
      %v225 = vlaneseq
      %v226 = vshrl.u32 %v225, 7
      %v227 = vsub.s32 0, %v226
      %v228 = vrot.slane %v223, %v227
      %v230 = vmul.f32 %v215, %v228
      %v231 = vmul.f32 %v216, %v228
      %v232 = vmul.f32 %v217, %v228
      %v233 = vmul.f32 %v218, %v228
      %v234 = vmul.f32 %v219, %v228
      %v235 = vmul.f32 %v220, %v228
      %v236 = vmul.f32 %v221, %v228
      %v237 = vmul.f32 %v222, %v228
      %v238 = vld [vmem:[%s2] sm:$0x1]
      %v240 = vlaneseq
      %v241 = vshrl.u32 %v240, 7
      %v242 = vsub.s32 0, %v241
      %v243 = vrot.slane %v238, %v242
      %v245 = vadd.f32 %v230, %v243
      %v246 = vadd.f32 %v231, %v243
      %v247 = vadd.f32 %v232, %v243
      %v248 = vadd.f32 %v233, %v243
      %v249 = vadd.f32 %v234, %v243
      %v250 = vadd.f32 %v235, %v243
      %v251 = vadd.f32 %v236, %v243
      %v252 = vadd.f32 %v237, %v243
      %v253 = vmax.f32 %v245, 0.0
      %v254 = vmax.f32 %v246, 0.0
      %v255 = vmax.f32 %v247, 0.0
      %v256 = vmax.f32 %v248, 0.0
      %v257 = vmax.f32 %v249, 0.0
      %v258 = vmax.f32 %v250, 0.0
      %v259 = vmax.f32 %v251, 0.0
      %v260 = vmax.f32 %v252, 0.0
      %vm261 = vcmask 64512
      %262 = vst.msk [vmem:[%s206] sm:$0xff] %vm261, %v253
      %263 = vst.msk [vmem:[%s206 + $0x8] sm:$0xff] %vm261, %v254
      %264 = vst.msk [vmem:[%s206 + $0x10] sm:$0xff] %vm261, %v255
      %265 = vst.msk [vmem:[%s206 + $0x18] sm:$0xff] %vm261, %v256
      %266 = vst.msk [vmem:[%s206 + $0x20] sm:$0xff] %vm261, %v257
      %267 = vst.msk [vmem:[%s206 + $0x28] sm:$0xff] %vm261, %v258
      %268 = vst.msk [vmem:[%s206 + $0x30] sm:$0xff] %vm261, %v259
      %269 = vst.msk [vmem:[%s206 + $0x38] sm:$0xff] %vm261, %v260
      %p270 = scmp.lt.s32.totalorder %s18, 1
      %s271 = scalar_select %p270, %s18, 1
      %p272 = scmp.lt.s32.totalorder %s19, 7
      %s273 = scalar_select %p272, %s19, 7
      %s274 = smul.addr %s273, 8
      %s275 = smul.addr %s271, 64
      %s276 = sadd.s32 %s274, %s275
      %s277 = smul.addr %s276, 8
      %s278 = scalar_lea.vmem %s3, %s277
      // Predicated region
      $region33: #{double_convolution.5} parent=31 // pred_check
        %p279 = pneg %p116
      $region34: #{double_convolution.5} parent=31 // pred_check_branch
        %281 = sbr.rel (%p279) target = $region36
      $region35: #{double_convolution.5} parent=31 // pred_region
        _
      $region36: #{double_convolution.5} parent=31 // pred_fallthru
        _
    $region32: #{double_convolution.5} parent=5 // pred_fallthru
      _
    %p282 = scmp.le.s32.totalorder 2, %s9
    // Predicated region
    $region37: #{double_convolution.5} parent=5 // pred_check
      %p283 = pneg %p282
    $region38: #{double_convolution.5} parent=5 // pred_check_branch
      %285 = sbr.rel (%p283) target = $region40
    $region39: #{double_convolution.5} parent=5 // pred_region
      %s286 = ssub.s32 %s9, 2
      // Predicated region
      $region41: #{double_convolution.5} parent=39 // pred_check
        %p287 = pneg %p122
      $region42: #{double_convolution.5} parent=39 // pred_check_branch
        %289 = sbr.rel (%p287) target = $region44
      $region43: #{double_convolution.5} parent=39 // pred_region
        %p290 = scmp.lt.s32.totalorder %s20, 1
        %s291 = scalar_select %p290, %s20, 1
        %p292 = scmp.lt.s32.totalorder %s21, 7
        %s293 = scalar_select %p292, %s21, 7
        %s294 = smul.addr %s293, 8
        %s295 = smul.addr %s291, 64
        %s296 = sadd.s32 %s294, %s295
        %s297 = smul.addr %s296, 8
        %s298 = scalar_lea.vmem %s3, %s297
      $region44: #{double_convolution.5} parent=39 // pred_fallthru
        _
    $region40: #{double_convolution.5} parent=5 // pred_fallthru
      _
  $region6: #{double_convolution.5} parent=0 // loop_footer
    %s13 = sadd.s32 1, %s9
  $region7: #{double_convolution.5} parent=0 // loop_footer_branch
    %8 = sbr.rel target = $region3
  $region8: #{double_convolution.5} parent=0 // loop_exit
    _

// kernel: double_convolution.3
$region0: #{double_convolution.3}
  #allocation0 [shape = 'u32[]', space=smem, size = 0x4, offset = 0x4, fixed_abs, tag = 'smem constant byte address 0x4 - core index']
  #allocation1 [shape = 'u32[144,128]{1,0:T(1,128)}', space=vmem, size = 0x12000, scoped, tag = 'internal scratch']
  #allocation2 [shape = 'f32[64,8]{1,0:T(8,128)}', space=vmem, size = 0x8000, scoped, tag = 'scratch operand']
  %s0 = inlined_call_operand.vmem [shape: bf16[2,8,8,8,4], index: 0, kind: input, shape index: {}]
  %s1 = inlined_call_operand.vmem [shape: bf16[3,36,8], index: 1, kind: input, shape index: {}]
  %s2 = inlined_call_operand.vmem [shape: bf16[2,8,8,8,8], index: 2, kind: output, shape index: {0}]
  %s3 = inlined_call_operand.vmem [shape: f32[2,8,2,8], index: 3, kind: output, shape index: {1}]
  %4 = xla_tuple %s2, %s3
  %s5 = sld [smem:[#allocation0]]
  $region61: #{double_convolution.3} parent=0
    _
  %s7 = ssub.s32 1, %s5
  %s8 = scalar_select 0, %s7, %s5
  loop: start=0, step=1, limit=50
  $region2: #{double_convolution.3} parent=0 // loop_pre_header
    _
  $region3: #{double_convolution.3} parent=0 // loop_header
    %s10 = sphi 0, %s14
    %p11 = scmp.ge.s32.totalorder %s10, 50
    %s17 = sphi 0, %s36
    %s18 = sphi 0, %s32
    %s19 = sphi 0, %s28
    %s20 = sphi 0, %s17
    %s21 = sphi 0, %s18
    %s22 = sphi 0, %s19
    %s23 = sphi 0, %s20
    %s24 = sphi 0, %s21
    %s25 = sphi 0, %s22
    %s53 = sphi 0, %s55
    %s56 = sphi 0, %s53
    %s57 = sphi 0, %s56
    %s73 = sphi 0, %s57
    %s77 = sphi 0, %s77
    %s79 = sphi 0, %s77
    %s80 = sphi 0, %s79
    %s94 = sphi 0, %s80
    %s102 = sphi 0, %s104
    %s105 = sphi 0, %s102
    %s106 = sphi 0, %s105
    %s122 = sphi 0, %s106
    %s130 = sphi 0, %s132
    %s133 = sphi 0, %s130
    %s134 = sphi 0, %s133
    %s150 = sphi 0, %s134
  $region4: #{double_convolution.3} parent=0 // loop_header_branch
    %13 = sbr.rel (%p11) target = $region8
  $region5: #{double_convolution.3} parent=0 // loop_body
    %s15 = ssub.s32 %s10, 1
    %s16 = ssub.s32 %s10, 2
    %s26 = sadd.s32 1, %s19
    %p27 = scmp.ge.s32.totalorder %s26, 3
    %s28 = scalar_select %p27, 0, %s26
    %s29 = sadd.s32 1, %s18
    %s30 = scalar_select %p27, %s29, %s18
    %p31 = scmp.ge.s32.totalorder %s30, 8
    %s32 = scalar_select %p31, 0, %s30
    %s33 = sadd.s32 1, %s17
    %s34 = scalar_select %p31, %s33, %s17
    %p35 = scmp.ge.s32.totalorder %s34, 2
    %s36 = scalar_select %p35, 0, %s34
    %s37 = sadd.s32 %s18, %s19
    %s38 = ssub.s32 %s37, 1
    %p39 = scmp.lt.s32.totalorder %s38, 7
    %s40 = scalar_select %p39, %s38, 7
    %p41 = scmp.gt.s32.totalorder %s40, 0
    %s42 = scalar_select %p41, %s40, 0
    %s43 = sadd.s32 %s32, %s28
    %s44 = ssub.s32 %s43, 1
    %p45 = scmp.lt.s32.totalorder %s44, 7
    %s46 = scalar_select %p45, %s44, 7
    %p47 = scmp.gt.s32.totalorder %s46, 0
    %s48 = scalar_select %p47, %s46, 0
    %s49 = ssub.s32 %s17, %s36
    %s50 = ssub.s32 %s42, %s48
    %s51 = sor.u32 %s49, %s50
    %p52 = scmp.eq.s32.totalorder %s51, 0
    %s54 = sadd.s32 %s53, 1
    %s55 = scalar_select %p52, %s53, %s54
    %p58 = pneg %p52
    %p59 = scmp.eq.s32.totalorder %s10, 47
    %p60 = por %p58, %p59
    %p61 = scmp.ne.s32.totalorder %s53, %s56
    %p62 = scmp.eq.s32.totalorder %s10, 0
    %p63 = por %p61, %p62
    %p64 = scmp.ne.s32.totalorder %s53, %s56
    %p65 = scmp.eq.s32.totalorder %s15, 47
    %p66 = por %p64, %p65
    %p67 = scmp.ne.s32.totalorder %s56, %s57
    %p68 = scmp.eq.s32.totalorder %s15, 0
    %p69 = por %p67, %p68
    %p70 = scmp.ne.s32.totalorder %s56, %s57
    %p71 = scmp.eq.s32.totalorder %s16, 47
    %p72 = por %p70, %p71
    %p74 = scmp.ne.s32.totalorder %s57, %s73
    %p75 = scmp.eq.s32.totalorder %s16, 0
    %p76 = por %p74, %p75
    %s78 = sadd.s32 %s77, 1
    %p81 = scmp.eq.s32.totalorder %s10, 47
    %p82 = scmp.ne.s32.totalorder %s77, %s79
    %p83 = scmp.eq.s32.totalorder %s10, 0
    %p84 = por %p82, %p83
    %p85 = scmp.ne.s32.totalorder %s77, %s79
    %p86 = scmp.eq.s32.totalorder %s15, 47
    %p87 = por %p85, %p86
    %p88 = scmp.ne.s32.totalorder %s79, %s80
    %p89 = scmp.eq.s32.totalorder %s15, 0
    %p90 = por %p88, %p89
    %p91 = scmp.ne.s32.totalorder %s79, %s80
    %p92 = scmp.eq.s32.totalorder %s16, 47
    %p93 = por %p91, %p92
    %p95 = scmp.ne.s32.totalorder %s80, %s94
    %p96 = scmp.eq.s32.totalorder %s16, 0
    %p97 = por %p95, %p96
    %s98 = ssub.s32 %s17, %s36
    %s99 = ssub.s32 %s18, %s32
    %s100 = sor.u32 %s98, %s99
    %p101 = scmp.eq.s32.totalorder %s100, 0
    %s103 = sadd.s32 %s102, 1
    %s104 = scalar_select %p101, %s102, %s103
    %p107 = pneg %p101
    %p108 = scmp.eq.s32.totalorder %s10, 47
    %p109 = por %p107, %p108
    %p110 = scmp.ne.s32.totalorder %s102, %s105
    %p111 = scmp.eq.s32.totalorder %s10, 0
    %p112 = por %p110, %p111
    %p113 = scmp.ne.s32.totalorder %s102, %s105
    %p114 = scmp.eq.s32.totalorder %s15, 47
    %p115 = por %p113, %p114
    %p116 = scmp.ne.s32.totalorder %s105, %s106
    %p117 = scmp.eq.s32.totalorder %s15, 0
    %p118 = por %p116, %p117
    %p119 = scmp.ne.s32.totalorder %s105, %s106
    %p120 = scmp.eq.s32.totalorder %s16, 47
    %p121 = por %p119, %p120
    %p123 = scmp.ne.s32.totalorder %s106, %s122
    %p124 = scmp.eq.s32.totalorder %s16, 0
    %p125 = por %p123, %p124
    %s126 = ssub.s32 %s17, %s36
    %s127 = ssub.s32 %s18, %s32
    %s128 = sor.u32 %s126, %s127
    %p129 = scmp.eq.s32.totalorder %s128, 0
    %s131 = sadd.s32 %s130, 1
    %s132 = scalar_select %p129, %s130, %s131
    %p135 = pneg %p129
    %p136 = scmp.eq.s32.totalorder %s10, 47
    %p137 = por %p135, %p136
    %p138 = scmp.ne.s32.totalorder %s130, %s133
    %p139 = scmp.eq.s32.totalorder %s10, 0
    %p140 = por %p138, %p139
    %p141 = scmp.ne.s32.totalorder %s130, %s133
    %p142 = scmp.eq.s32.totalorder %s15, 47
    %p143 = por %p141, %p142
    %p144 = scmp.ne.s32.totalorder %s133, %s134
    %p145 = scmp.eq.s32.totalorder %s15, 0
    %p146 = por %p144, %p145
    %p147 = scmp.ne.s32.totalorder %s133, %s134
    %p148 = scmp.eq.s32.totalorder %s16, 47
    %p149 = por %p147, %p148
    %p151 = scmp.ne.s32.totalorder %s134, %s150
    %p152 = scmp.eq.s32.totalorder %s16, 0
    %p153 = por %p151, %p152
    %p154 = scmp.le.s32.totalorder 1, %s10
    %p155 = scmp.lt.s32.totalorder %s10, 49
    %p156 = pnand %p154, %p155
    %p157 = pneg %p156
    // Predicated region
    $region9: #{double_convolution.3} parent=5 // pred_check
      _
    $region10: #{double_convolution.3} parent=5 // pred_check_branch
      %159 = sbr.rel (%p156) target = $region12
    $region11: #{double_convolution.3} parent=5 // pred_region
      %s160 = ssub.s32 %s10, 1
      // Predicated region
      $region13: #{double_convolution.3} parent=11 // pred_check
        %p161 = pneg %p90
      $region14: #{double_convolution.3} parent=11 // pred_check_branch
        %163 = sbr.rel (%p161) target = $region16
      $region15: #{double_convolution.3} parent=11 // pred_region
        _
      $region16: #{double_convolution.3} parent=11 // pred_fallthru
        _
    $region12: #{double_convolution.3} parent=5 // pred_fallthru
      _
    %p164 = scmp.lt.s32.totalorder %s10, 48
    // Predicated region
    $region17: #{double_convolution.3} parent=5 // pred_check
      %p165 = pneg %p164
    $region18: #{double_convolution.3} parent=5 // pred_check_branch
      %167 = sbr.rel (%p165) target = $region20
    $region19: #{double_convolution.3} parent=5 // pred_region
      // Predicated region
      $region21: #{double_convolution.3} parent=19 // pred_check
        %p168 = pneg %p63
      $region22: #{double_convolution.3} parent=19 // pred_check_branch
        %170 = sbr.rel (%p168) target = $region24
      $region23: #{double_convolution.3} parent=19 // pred_region
        %s171 = sadd.s32 %s18, %s19
        %s172 = ssub.s32 %s171, 1
        %p173 = scmp.lt.s32.totalorder %s172, 7
        %s174 = scalar_select %p173, %s172, 7
        %p175 = scmp.gt.s32.totalorder %s174, 0
        %s176 = scalar_select %p175, %s174, 0
        %p177 = scmp.lt.s32.totalorder %s17, 1
        %s178 = scalar_select %p177, %s17, 1
        %p179 = scmp.lt.s32.totalorder %s176, 7
        %s180 = scalar_select %p179, %s176, 7
        %s181 = smul.addr %s180, 8
        %s182 = smul.addr %s178, 64
        %s183 = sadd.s32 %s181, %s182
        %s184 = smul.addr %s183, 4
        %s185 = scalar_lea.vmem %s0, %s184
        %s186 = sadd.s32 %s18, %s19
        %s187 = ssub.s32 %s186, 1
        %p188 = scmp.lt.s32.totalorder %s187, 7
        %s189 = scalar_select %p188, %s187, 7
        %p190 = scmp.gt.s32.totalorder %s189, 0
        %s191 = scalar_select %p190, %s189, 0
      $region24: #{double_convolution.3} parent=19 // pred_fallthru
        _
    $region20: #{double_convolution.3} parent=5 // pred_fallthru
      _
    %p192 = scmp.le.s32.totalorder 1, %s10
    %p193 = scmp.lt.s32.totalorder %s10, 49
    %p194 = pnand %p192, %p193
    %p195 = pneg %p194
    // Predicated region
    $region25: #{double_convolution.3} parent=5 // pred_check
      _
    $region26: #{double_convolution.3} parent=5 // pred_check_branch
      %197 = sbr.rel (%p194) target = $region28
    $region27: #{double_convolution.3} parent=5 // pred_region
      %s198 = ssub.s32 %s10, 1
      %s199 = sadd.s32 %s21, %s22
      %s200 = ssub.s32 %s199, 1
      %p201 = scmp.lt.s32.totalorder %s200, 7
      %s202 = scalar_select %p201, %s200, 7
      %p203 = scmp.gt.s32.totalorder %s202, 0
      %s204 = scalar_select %p203, %s202, 0
      %p205 = scmp.lt.s32.totalorder %s20, 1
      %s206 = scalar_select %p205, %s20, 1
      %p207 = scmp.lt.s32.totalorder %s204, 7
      %s208 = scalar_select %p207, %s204, 7
      %s209 = smul.addr %s208, 8
      %s210 = smul.addr %s206, 64
      %s211 = sadd.s32 %s209, %s210
      %s212 = smul.addr %s211, 4
      %s213 = scalar_lea.vmem %s0, %s212
      %p214 = pneg %p69
      %p215 = pneg %p66
      %p216 = pneg %p90
      %p217 = pneg %p87
      %p218 = pneg %p118
      %p219 = pneg %p115
      %p220 = scmp.lt.s32.totalorder %s20, 1
      %s221 = scalar_select %p220, %s20, 1
      %p222 = scmp.lt.s32.totalorder %s21, 7
      %s223 = scalar_select %p222, %s21, 7
      %s224 = smul.addr %s223, 8
      %s225 = smul.addr %s221, 64
      %s226 = sadd.s32 %s224, %s225
      %s227 = smul.addr %s226, 4
      %s228 = scalar_lea.vmem %s2, %s227
      %p229 = pneg %p146
      %p230 = pneg %p143
      %p231 = scmp.lt.s32.totalorder %s20, 1
      %s232 = scalar_select %p231, %s20, 1
      %p233 = scmp.lt.s32.totalorder %s21, 7
      %s234 = scalar_select %p233, %s21, 7
      %s235 = smul.addr %s232, 8
      %s236 = sadd.s32 %s234, %s235
      %s237 = smul.addr %s236, 2
      %s238 = scalar_lea.vmem %s3, %s237
      %s239 = sadd.s32 %s21, %s22
      %s240 = ssub.s32 %s239, 1
      %p241 = scmp.lt.s32.totalorder %s240, 7
      %s242 = scalar_select %p241, %s240, 7
      %p243 = scmp.gt.s32.totalorder %s242, 0
      %s244 = scalar_select %p243, %s242, 0
      %p245 = scmp.lt.s32.totalorder %s20, 1
      %s246 = scalar_select %p245, %s20, 1
      %p247 = scmp.lt.s32.totalorder %s244, 7
      %s248 = scalar_select %p247, %s244, 7
      %s249 = smul.addr %s248, 8
      %s250 = smul.addr %s246, 64
      %s251 = sadd.s32 %s249, %s250
      %s252 = smul.addr %s251, 4
      %s253 = scalar_lea.vmem %s0, %s252
      %s254 = sadd.s32 %s21, %s22
      %s255 = ssub.s32 %s254, 1
      %p256 = scmp.lt.s32.totalorder %s255, 7
      %s257 = scalar_select %p256, %s255, 7
      %p258 = scmp.gt.s32.totalorder %s257, 0
      %s259 = scalar_select %p258, %s257, 0
      %p260 = scmp.lt.s32.totalorder %s20, 1
      %s261 = scalar_select %p260, %s20, 1
      %p262 = scmp.lt.s32.totalorder %s21, 7
      %s263 = scalar_select %p262, %s21, 7
      %s264 = smul.addr %s263, 8
      %s265 = smul.addr %s261, 64
      %s266 = sadd.s32 %s264, %s265
      %s267 = smul.addr %s266, 4
      %s268 = scalar_lea.vmem %s2, %s267
      %p269 = scmp.lt.s32.totalorder %s20, 1
      %s270 = scalar_select %p269, %s20, 1
      %p271 = scmp.lt.s32.totalorder %s21, 7
      %s272 = scalar_select %p271, %s21, 7
      %s273 = smul.addr %s270, 8
      %s274 = sadd.s32 %s272, %s273
      %s275 = smul.addr %s274, 2
      %s276 = scalar_lea.vmem %s3, %s275
      %p278 = scmp.eq.s32.totalorder %s22, 0
      // Predicated region
      $region29: #{double_convolution.3} parent=27 // pred_check
        %p279 = pneg %p278
      $region30: #{double_convolution.3} parent=27 // pred_check_branch
        %281 = sbr.rel (%p279) target = $region32
      $region31: #{double_convolution.3} parent=27 // pred_region
        %vm282 = vcmask 64512
        %283 = vst.msk [vmem:[#allocation2] sm:$0xff] %vm282, 0.0
        %284 = vst.msk [vmem:[#allocation2 + $0x8] sm:$0xff] %vm282, 0.0
        %285 = vst.msk [vmem:[#allocation2 + $0x10] sm:$0xff] %vm282, 0.0
        %286 = vst.msk [vmem:[#allocation2 + $0x18] sm:$0xff] %vm282, 0.0
        %287 = vst.msk [vmem:[#allocation2 + $0x20] sm:$0xff] %vm282, 0.0
        %288 = vst.msk [vmem:[#allocation2 + $0x28] sm:$0xff] %vm282, 0.0
        %289 = vst.msk [vmem:[#allocation2 + $0x30] sm:$0xff] %vm282, 0.0
        %290 = vst.msk [vmem:[#allocation2 + $0x38] sm:$0xff] %vm282, 0.0
      $region32: #{double_convolution.3} parent=27 // pred_fallthru
        _
      %s291 = sadd.s32 %s21, %s22
      %s292 = ssub.s32 %s291, 1
      %p293 = scmp.ge.s32.totalorder %s292, 0
      %p294 = scmp.lt.s32.totalorder %s292, 8
      %p295 = pnand %p293, %p294
      %p296 = pneg %p295
      // Predicated region
      $region33: #{double_convolution.3} parent=27 // pred_check
        _
      $region34: #{double_convolution.3} parent=27 // pred_check_branch
        %298 = sbr.rel (%p295) target = $region36
      $region35: #{double_convolution.3} parent=27 // pred_region
        %v299 = vld [vmem:[%s253] sm:$0xf]
        %v300 = vld [vmem:[%s253 + $0x4] sm:$0xf]
        %v301 = vld [vmem:[%s253 + $0x8] sm:$0xf]
        %v302 = vld [vmem:[%s253 + $0xc] sm:$0xf]
        %v303 = vld [vmem:[%s253 + $0x10] sm:$0xf]
        %v304 = vld [vmem:[%s253 + $0x14] sm:$0xf]
        %v305 = vld [vmem:[%s253 + $0x18] sm:$0xf]
        %v306 = vld [vmem:[%s253 + $0x1c] sm:$0xf]
        %v315 = vunpack.c.l.b16 %v299
        %v316 = vunpack.c.l.b16 %v300
        %v317 = vunpack.c.l.b16 %v301
        %v318 = vunpack.c.l.b16 %v302
        %v319 = vunpack.c.l.b16 %v303
        %v320 = vunpack.c.l.b16 %v304
        %v321 = vunpack.c.l.b16 %v305
        %v322 = vunpack.c.l.b16 %v306
        %v323 = vpack.c.b16 %v315, %v315
        %v324 = vpack.c.b16 %v316, %v316
        %v325 = vpack.c.b16 %v317, %v317
        %v326 = vpack.c.b16 %v318, %v318
        %v327 = vpack.c.b16 %v319, %v319
        %v328 = vpack.c.b16 %v320, %v320
        %v329 = vpack.c.b16 %v321, %v321
        %v330 = vpack.c.b16 %v322, %v322
        %v332 = vshrl.u32 %v323, 16
        %v334 = vrot.slane %v332, 7
        %v335 = vshll.u32 %v323, 16
        %v337 = vor.u32 %v334, %v335
        %v339 = vshrl.u32 %v324, 16
        %v341 = vrot.slane %v339, 7
        %v342 = vshll.u32 %v324, 16
        %v344 = vor.u32 %v341, %v342
        %v346 = vshrl.u32 %v325, 16
        %v348 = vrot.slane %v346, 7
        %v349 = vshll.u32 %v325, 16
        %v351 = vor.u32 %v348, %v349
        %v353 = vshrl.u32 %v326, 16
        %v355 = vrot.slane %v353, 7
        %v356 = vshll.u32 %v326, 16
        %v358 = vor.u32 %v355, %v356
        %v360 = vshrl.u32 %v327, 16
        %v362 = vrot.slane %v360, 7
        %v363 = vshll.u32 %v327, 16
        %v365 = vor.u32 %v362, %v363
        %v367 = vshrl.u32 %v328, 16
        %v369 = vrot.slane %v367, 7
        %v370 = vshll.u32 %v328, 16
        %v372 = vor.u32 %v369, %v370
        %v374 = vshrl.u32 %v329, 16
        %v376 = vrot.slane %v374, 7
        %v377 = vshll.u32 %v329, 16
        %v379 = vor.u32 %v376, %v377
        %v381 = vshrl.u32 %v330, 16
        %v383 = vrot.slane %v381, 7
        %v384 = vshll.u32 %v330, 16
        %v386 = vor.u32 %v383, %v384
        %vm395 = vcmask 1040384
        %vm396 = vsmask.f32 256
        %vm397 = vmand %vm395, %vm396
        %v398 = vsel %vm397, 0, %v337
        %v399 = vsel %vm397, 0, %v344
        %v400 = vsel %vm397, 0, %v351
        %v401 = vsel %vm397, 0, %v358
        %v402 = vsel %vm397, 0, %v365
        %v403 = vsel %vm397, 0, %v372
        %v404 = vsel %vm397, 0, %v379
        %v405 = vsel %vm397, 0, %v386
        %vm406 = vcmask 1044480
        %vm407 = vsmask.f32 4352
        %vm408 = vmand %vm406, %vm407
        %v409 = vsel %vm408, %v398, 0
        %v410 = vsel %vm408, %v399, 0
        %v411 = vsel %vm408, %v400, 0
        %v412 = vsel %vm408, %v401, 0
        %v413 = vsel %vm408, %v402, 0
        %v414 = vsel %vm408, %v403, 0
        %v415 = vsel %vm408, %v404, 0
        %v416 = vsel %vm408, %v405, 0
        %v425 = vunpack.c.l.b16 0
        %v426 = vunpack.c.h.b16 0
        %v427 = vunpack.c.l.b16 %v409
        %v428 = vunpack.c.h.b16 %v409
        %v429 = vunpack.c.l.b16 %v410
        %v430 = vunpack.c.h.b16 %v410
        %v431 = vunpack.c.l.b16 %v411
        %v432 = vunpack.c.h.b16 %v411
        %v433 = vunpack.c.l.b16 %v412
        %v434 = vunpack.c.h.b16 %v412
        %v435 = vunpack.c.l.b16 %v413
        %v436 = vunpack.c.h.b16 %v413
        %v437 = vunpack.c.l.b16 %v414
        %v438 = vunpack.c.h.b16 %v414
        %v439 = vunpack.c.l.b16 %v415
        %v440 = vunpack.c.h.b16 %v415
        %v441 = vpack.c.b16 %v425, %v425
        %v442 = vpack.c.b16 %v426, %v426
        %v443 = vpack.c.b16 %v427, %v427
        %v444 = vpack.c.b16 %v428, %v428
        %v445 = vpack.c.b16 %v429, %v429
        %v446 = vpack.c.b16 %v430, %v430
        %v447 = vpack.c.b16 %v431, %v431
        %v448 = vpack.c.b16 %v432, %v432
        %v449 = vpack.c.b16 %v433, %v433
        %v450 = vpack.c.b16 %v434, %v434
        %v451 = vpack.c.b16 %v435, %v435
        %v452 = vpack.c.b16 %v436, %v436
        %v453 = vpack.c.b16 %v437, %v437
        %v454 = vpack.c.b16 %v438, %v438
        %v455 = vpack.c.b16 %v439, %v439
        %v456 = vpack.c.b16 %v440, %v440
        %vm457 = vsmask.f32 3328
        %vm458 = vsmask.f32 7440
        %vm459 = vmor %vm457, %vm458
        %v461 = vshrl.u32 %v441, 16
        %v463 = vrot.slane %v461, 4
        %v464 = vshll.u32 %v441, 16
        %v466 = vrot.slane %v464, 5
        %v467 = vor.u32 %v463, %v466
        %v468 = vrot.slane %v467, 4
        %v470 = vshll.u32 %v442, 16
        %v472 = vrot.slane %v470, 5
        %v473 = vsel %vm459, %v468, %v472
        %v475 = vshrl.u32 %v443, 16
        %v477 = vrot.slane %v475, 4
        %v478 = vshll.u32 %v443, 16
        %v480 = vrot.slane %v478, 5
        %v481 = vor.u32 %v477, %v480
        %v482 = vrot.slane %v481, 4
        %v484 = vshll.u32 %v444, 16
        %v486 = vrot.slane %v484, 5
        %v487 = vsel %vm459, %v482, %v486
        %v489 = vshrl.u32 %v445, 16
        %v491 = vrot.slane %v489, 4
        %v492 = vshll.u32 %v445, 16
        %v494 = vrot.slane %v492, 5
        %v495 = vor.u32 %v491, %v494
        %v496 = vrot.slane %v495, 4
        %v498 = vshll.u32 %v446, 16
        %v500 = vrot.slane %v498, 5
        %v501 = vsel %vm459, %v496, %v500
        %v503 = vshrl.u32 %v447, 16
        %v505 = vrot.slane %v503, 4
        %v506 = vshll.u32 %v447, 16
        %v508 = vrot.slane %v506, 5
        %v509 = vor.u32 %v505, %v508
        %v510 = vrot.slane %v509, 4
        %v512 = vshll.u32 %v448, 16
        %v514 = vrot.slane %v512, 5
        %v515 = vsel %vm459, %v510, %v514
        %v517 = vshrl.u32 %v449, 16
        %v519 = vrot.slane %v517, 4
        %v520 = vshll.u32 %v449, 16
        %v522 = vrot.slane %v520, 5
        %v523 = vor.u32 %v519, %v522
        %v524 = vrot.slane %v523, 4
        %v526 = vshll.u32 %v450, 16
        %v528 = vrot.slane %v526, 5
        %v529 = vsel %vm459, %v524, %v528
        %v531 = vshrl.u32 %v451, 16
        %v533 = vrot.slane %v531, 4
        %v534 = vshll.u32 %v451, 16
        %v536 = vrot.slane %v534, 5
        %v537 = vor.u32 %v533, %v536
        %v538 = vrot.slane %v537, 4
        %v540 = vshll.u32 %v452, 16
        %v542 = vrot.slane %v540, 5
        %v543 = vsel %vm459, %v538, %v542
        %v545 = vshrl.u32 %v453, 16
        %v547 = vrot.slane %v545, 4
        %v548 = vshll.u32 %v453, 16
        %v550 = vrot.slane %v548, 5
        %v551 = vor.u32 %v547, %v550
        %v552 = vrot.slane %v551, 4
        %v554 = vshll.u32 %v454, 16
        %v556 = vrot.slane %v554, 5
        %v557 = vsel %vm459, %v552, %v556
        %v559 = vshrl.u32 %v455, 16
        %v561 = vrot.slane %v559, 4
        %v562 = vshll.u32 %v455, 16
        %v564 = vrot.slane %v562, 5
        %v565 = vor.u32 %v561, %v564
        %v566 = vrot.slane %v565, 4
        %v568 = vshll.u32 %v456, 16
        %v570 = vrot.slane %v568, 5
        %v571 = vsel %vm459, %v566, %v570
        %vm572 = vcmask 1042432
        %vm573 = vcmask 1046532
        %vm574 = vmor %vm572, %vm573
        %v575 = vrot.slane %v441, 5
        %v576 = vrot.slane %v575, 4
        %v577 = vrot.slane %v442, 5
        %v578 = vsel %vm574, %v576, %v577
        %v579 = vrot.slane %v443, 5
        %v580 = vrot.slane %v579, 4
        %v581 = vrot.slane %v444, 5
        %v582 = vsel %vm574, %v580, %v581
        %v583 = vrot.slane %v445, 5
        %v584 = vrot.slane %v583, 4
        %v585 = vrot.slane %v446, 5
        %v586 = vsel %vm574, %v584, %v585
        %v587 = vrot.slane %v447, 5
        %v588 = vrot.slane %v587, 4
        %v589 = vrot.slane %v448, 5
        %v590 = vsel %vm574, %v588, %v589
        %v591 = vrot.slane %v449, 5
        %v592 = vrot.slane %v591, 4
        %v593 = vrot.slane %v450, 5
        %v594 = vsel %vm574, %v592, %v593
        %v595 = vrot.slane %v451, 5
        %v596 = vrot.slane %v595, 4
        %v597 = vrot.slane %v452, 5
        %v598 = vsel %vm574, %v596, %v597
        %v599 = vrot.slane %v453, 5
        %v600 = vrot.slane %v599, 4
        %v601 = vrot.slane %v454, 5
        %v602 = vsel %vm574, %v600, %v601
        %v603 = vrot.slane %v455, 5
        %v604 = vrot.slane %v603, 4
        %v605 = vrot.slane %v456, 5
        %v606 = vsel %vm574, %v604, %v605
        %v608 = vunpack.c.l.b16 %v416
        %v609 = vunpack.c.h.b16 %v416
        %v610 = vpack.c.b16 %v608, %v608
        %v611 = vpack.c.b16 %v609, %v609
        %v613 = vshrl.u32 %v610, 16
        %v615 = vrot.slane %v613, 4
        %v616 = vshll.u32 %v610, 16
        %v618 = vrot.slane %v616, 5
        %v619 = vor.u32 %v615, %v618
        %v620 = vrot.slane %v619, 4
        %v622 = vshll.u32 %v611, 16
        %v624 = vrot.slane %v622, 5
        %v625 = vsel %vm459, %v620, %v624
        %v626 = vrot.slane %v610, 5
        %v627 = vrot.slane %v626, 4
        %v628 = vrot.slane %v611, 5
        %v629 = vsel %vm574, %v627, %v628
        %v630 = vpack.c.b16 %v427, %v425
        %v631 = vpack.c.b16 %v431, %v429
        %v632 = vpack.c.b16 %v435, %v433
        %v633 = vpack.c.b16 %v439, %v437
        %v634 = vunpack.c.l.b16 %v473
        %v635 = vunpack.c.l.b16 %v487
        %v636 = vunpack.c.l.b16 %v501
        %v637 = vunpack.c.l.b16 %v515
        %v638 = vunpack.c.l.b16 %v529
        %v639 = vunpack.c.l.b16 %v543
        %v640 = vunpack.c.l.b16 %v557
        %v641 = vunpack.c.l.b16 %v571
        %v642 = vpack.c.b16 %v635, %v634
        %v643 = vpack.c.b16 %v637, %v636
        %v644 = vpack.c.b16 %v639, %v638
        %v645 = vpack.c.b16 %v641, %v640
        %646 = vrot.lane.b32.xlu0 %v642, 4
        %v647 = vpop.permute.xlu0 %646
        %648 = vrot.lane.b32.xlu0 %v643, 4
        %v649 = vpop.permute.xlu0 %648
        %650 = vrot.lane.b32.xlu0 %v644, 4
        %v651 = vpop.permute.xlu0 %650
        %652 = vrot.lane.b32.xlu0 %v645, 4
        %v653 = vpop.permute.xlu0 %652
        %v654 = vunpack.c.l.b16 %v578
        %v655 = vunpack.c.l.b16 %v582
        %v656 = vunpack.c.l.b16 %v586
        %v657 = vunpack.c.l.b16 %v590
        %v658 = vunpack.c.l.b16 %v594
        %v659 = vunpack.c.l.b16 %v598
        %v660 = vunpack.c.l.b16 %v602
        %v661 = vunpack.c.l.b16 %v606
        %v662 = vpack.c.b16 %v655, %v654
        %v663 = vpack.c.b16 %v657, %v656
        %v664 = vpack.c.b16 %v659, %v658
        %v665 = vpack.c.b16 %v661, %v660
        %666 = vrot.lane.b32.xlu0 %v662, 8
        %v667 = vpop.permute.xlu0 %666
        %668 = vrot.lane.b32.xlu0 %v663, 8
        %v669 = vpop.permute.xlu0 %668
        %670 = vrot.lane.b32.xlu0 %v664, 8
        %v671 = vpop.permute.xlu0 %670
        %672 = vrot.lane.b32.xlu0 %v665, 8
        %v673 = vpop.permute.xlu0 %672
        %v674 = vpack.c.b16 %v429, %v427
        %v675 = vpack.c.b16 %v433, %v431
        %v676 = vpack.c.b16 %v437, %v435
        %v677 = vpack.c.b16 %v608, %v439
        %678 = vrot.lane.b32.xlu0 %v674, 12
        %v679 = vpop.permute.xlu0 %678
        %680 = vrot.lane.b32.xlu0 %v675, 12
        %v681 = vpop.permute.xlu0 %680
        %682 = vrot.lane.b32.xlu0 %v676, 12
        %v683 = vpop.permute.xlu0 %682
        %684 = vrot.lane.b32.xlu0 %v677, 12
        %v685 = vpop.permute.xlu0 %684
        %v686 = vunpack.c.l.b16 %v625
        %v687 = vpack.c.b16 %v636, %v635
        %v688 = vpack.c.b16 %v638, %v637
        %v689 = vpack.c.b16 %v640, %v639
        %v690 = vpack.c.b16 %v686, %v641
        %691 = vrot.lane.b32.xlu0 %v687, 16
        %v692 = vpop.permute.xlu0 %691
        %693 = vrot.lane.b32.xlu0 %v688, 16
        %v694 = vpop.permute.xlu0 %693
        %695 = vrot.lane.b32.xlu0 %v689, 16
        %v696 = vpop.permute.xlu0 %695
        %697 = vrot.lane.b32.xlu0 %v690, 16
        %v698 = vpop.permute.xlu0 %697
        %v699 = vunpack.c.l.b16 %v629
        %v700 = vpack.c.b16 %v656, %v655
        %v701 = vpack.c.b16 %v658, %v657
        %v702 = vpack.c.b16 %v660, %v659
        %v703 = vpack.c.b16 %v699, %v661
        %704 = vrot.lane.b32.xlu0 %v700, 20
        %v705 = vpop.permute.xlu0 %704
        %706 = vrot.lane.b32.xlu0 %v701, 20
        %v707 = vpop.permute.xlu0 %706
        %708 = vrot.lane.b32.xlu0 %v702, 20
        %v709 = vpop.permute.xlu0 %708
        %710 = vrot.lane.b32.xlu0 %v703, 20
        %v711 = vpop.permute.xlu0 %710
        %v712 = vpack.c.b16 %v425, %v608
        %713 = vrot.lane.b32.xlu0 %v631, 24
        %v714 = vpop.permute.xlu0 %713
        %715 = vrot.lane.b32.xlu0 %v632, 24
        %v716 = vpop.permute.xlu0 %715
        %717 = vrot.lane.b32.xlu0 %v633, 24
        %v718 = vpop.permute.xlu0 %717
        %719 = vrot.lane.b32.xlu0 %v712, 24
        %v720 = vpop.permute.xlu0 %719
        %v721 = vpack.c.b16 %v634, %v686
        %722 = vrot.lane.b32.xlu0 %v643, 28
        %v723 = vpop.permute.xlu0 %722
        %724 = vrot.lane.b32.xlu0 %v644, 28
        %v725 = vpop.permute.xlu0 %724
        %726 = vrot.lane.b32.xlu0 %v645, 28
        %v727 = vpop.permute.xlu0 %726
        %728 = vrot.lane.b32.xlu0 %v721, 28
        %v729 = vpop.permute.xlu0 %728
        %v730 = vpack.c.b16 %v654, %v699
        %731 = vrot.lane.b32.xlu0 %v663, 32
        %v732 = vpop.permute.xlu0 %731
        %733 = vrot.lane.b32.xlu0 %v664, 32
        %v734 = vpop.permute.xlu0 %733
        %735 = vrot.lane.b32.xlu0 %v665, 32
        %v736 = vpop.permute.xlu0 %735
        %737 = vrot.lane.b32.xlu0 %v730, 32
        %v738 = vpop.permute.xlu0 %737
        %vm739 = vcmask 31744
        %v742 = vsel %vm739, %v630, %v647
        %v745 = vsel %vm739, %v631, %v649
        %v748 = vsel %vm739, %v632, %v651
        %v751 = vsel %vm739, %v633, %v653
        %vm752 = vcmask 64512
        %v754 = vsel %vm752, %v742, %v667
        %v756 = vsel %vm752, %v745, %v669
        %v758 = vsel %vm752, %v748, %v671
        %v760 = vsel %vm752, %v751, %v673
        %vm761 = vcmask 97280
        %v763 = vsel %vm761, %v754, %v679
        %v765 = vsel %vm761, %v756, %v681
        %v767 = vsel %vm761, %v758, %v683
        %v769 = vsel %vm761, %v760, %v685
        %vm770 = vcmask 130048
        %v772 = vsel %vm770, %v763, %v692
        %v774 = vsel %vm770, %v765, %v694
        %v776 = vsel %vm770, %v767, %v696
        %v778 = vsel %vm770, %v769, %v698
        %vm779 = vcmask 162816
        %v781 = vsel %vm779, %v772, %v705
        %v783 = vsel %vm779, %v774, %v707
        %v785 = vsel %vm779, %v776, %v709
        %v787 = vsel %vm779, %v778, %v711
        %vm788 = vcmask 195584
        %v790 = vsel %vm788, %v781, %v714
        %v792 = vsel %vm788, %v783, %v716
        %v794 = vsel %vm788, %v785, %v718
        %v796 = vsel %vm788, %v787, %v720
        %vm797 = vcmask 228352
        %v799 = vsel %vm797, %v790, %v723
        %v801 = vsel %vm797, %v792, %v725
        %v803 = vsel %vm797, %v794, %v727
        %v805 = vsel %vm797, %v796, %v729
        %vm806 = vcmask 261120
        %v808 = vsel %vm806, %v799, %v732
        %v810 = vsel %vm806, %v801, %v734
        %v812 = vsel %vm806, %v803, %v736
        %v814 = vsel %vm806, %v805, %v738
        %v815 = vld [vmem:[#allocation2] sm:$0xff]
        %v816 = vld [vmem:[#allocation2 + $0x8] sm:$0xff]
        %v817 = vld [vmem:[#allocation2 + $0x10] sm:$0xff]
        %v818 = vld [vmem:[#allocation2 + $0x18] sm:$0xff]
        %v819 = vld [vmem:[#allocation2 + $0x20] sm:$0xff]
        %v820 = vld [vmem:[#allocation2 + $0x28] sm:$0xff]
        %v821 = vld [vmem:[#allocation2 + $0x30] sm:$0xff]
        %v822 = vld [vmem:[#allocation2 + $0x38] sm:$0xff]
        %s823 = smul.u32 %s22, 5
        %s824 = smul.addr %s823, 4
        %s825 = scalar_lea.vmem %s1, %s824
        %v826 = vld [vmem:[%s825] sm:$0xf]
        %v827 = vld [vmem:[%s825 + $0x4] sm:$0xf]
        %v828 = vld [vmem:[%s825 + $0x8] sm:$0xf]
        %v829 = vld [vmem:[%s825 + $0xc] sm:$0xf]
        %v830 = vld [vmem:[%s825 + $0x10] sm:$0x3]
        %v836 = vunpack.c.l.b16 %v826
        %v837 = vunpack.c.l.b16 %v827
        %v838 = vunpack.c.l.b16 %v828
        %v839 = vunpack.c.l.b16 %v829
        %v840 = vunpack.c.l.b16 %v830
        %v841 = vpack.c.b16 %v837, %v836
        %v842 = vpack.c.b16 %v839, %v838
        %v843 = vpack.c.b16 %v840, %v840
        %vm846 = vcmask 293888
        %v847 = vsel %vm846, %v808, 0
        %v849 = vsel %vm846, %v810, 0
        %v851 = vsel %vm846, %v812, 0
        %v853 = vsel %vm846, %v814, 0
        %vm855 = vcmask 1041408
        %v857 = vsel %vm855, %v843, 0
        %859 = vmatprep.subr.bf16.mxu0 0
        %860 = vmatpush1.bf16.msra.mxu0 0
        %861 = vmatprep.subr.bf16.mxu0 0
        %862 = vmatpush1.bf16.msra.mxu0 0
        %863 = vmatprep.subr.bf16.mxu0 0
        %864 = vmatpush1.bf16.msra.mxu0 0
        %865 = vmatprep.subr.bf16.mxu0 0
        %866 = vmatpush1.bf16.msra.mxu0 0
        %867 = vmatprep.subr.bf16.mxu0 0
        %868 = vmatpush1.bf16.msra.mxu0 0
        %869 = vmatprep.subr.bf16.mxu0 0
        %870 = vmatpush1.bf16.msra.mxu0 %v857
        %871 = vmatprep.subr.bf16.mxu0 0
        %872 = vmatpush1.bf16.msra.mxu0 %v842
        %873 = vmatprep.subr.bf16.mxu0 0
        %874 = vmatpush1.bf16.msra.mxu0 %v841
        %875 = vmatprep.subr.bf16.mxu0 0
        %876 = vmatpush2.bf16.msra.mxu0 0
        %877 = vmatprep.subr.bf16.mxu0 0
        %878 = vmatpush2.bf16.msra.mxu0 0
        %879 = vmatprep.subr.bf16.mxu0 0
        %880 = vmatpush2.bf16.msra.mxu0 0
        %881 = vmatprep.subr.bf16.mxu0 0
        %882 = vmatpush2.bf16.msra.mxu0 0
        %883 = vmatprep.subr.bf16.mxu0 0
        %884 = vmatpush2.bf16.msra.mxu0 0
        %885 = vmatprep.subr.bf16.mxu0 0
        %886 = vmatpush2.bf16.msra.mxu0 0
        %887 = vmatprep.subr.bf16.mxu0 0
        %888 = vmatpush2.bf16.msra.mxu0 0
        %889 = vmatprep.subr.bf16.mxu0 0
        %890 = vmatpush2.bf16.msra.mxu0 0
        %891 = vmatprep.mubr.bf16.mxu0 0
        %892 = vmatmul.mubr.bf16.gmra.mxu0 %v847
        %v893 = vpop.f32.mrf.mxu0
        %v894 = vadd.f32 0.0, %v893
        %v895 = vpop.f32.mrf.mxu0
        %v896 = vpop.f32.mrf.mxu0
        %v897 = vadd.f32 0.0, %v896
        %v898 = vpop.f32.mrf.mxu0
        %899 = vmatprep.mubr.bf16.mxu0 0
        %900 = vmatmul.mubr.bf16.gmra.mxu0 %v849
        %v901 = vpop.f32.mrf.mxu0
        %v902 = vadd.f32 0.0, %v901
        %v903 = vpop.f32.mrf.mxu0
        %v904 = vpop.f32.mrf.mxu0
        %v905 = vadd.f32 0.0, %v904
        %v906 = vpop.f32.mrf.mxu0
        %907 = vmatprep.mubr.bf16.mxu0 0
        %908 = vmatmul.mubr.bf16.gmra.mxu0 %v851
        %v909 = vpop.f32.mrf.mxu0
        %v910 = vadd.f32 0.0, %v909
        %v911 = vpop.f32.mrf.mxu0
        %v912 = vpop.f32.mrf.mxu0
        %v913 = vadd.f32 0.0, %v912
        %v914 = vpop.f32.mrf.mxu0
        %915 = vmatprep.mubr.bf16.mxu0 0
        %916 = vmatmul.mubr.bf16.gmra.mxu0 %v853
        %v917 = vpop.f32.mrf.mxu0
        %v918 = vadd.f32 0.0, %v917
        %v919 = vpop.f32.mrf.mxu0
        %v920 = vpop.f32.mrf.mxu0
        %v921 = vadd.f32 0.0, %v920
        %v922 = vpop.f32.mrf.mxu0
        %923 = vdwg.mxu0
        %v924 = vadd.f32 %v815, %v894
        %v925 = vadd.f32 %v816, %v897
        %v926 = vadd.f32 %v817, %v902
        %v927 = vadd.f32 %v818, %v905
        %v928 = vadd.f32 %v819, %v910
        %v929 = vadd.f32 %v820, %v913
        %v930 = vadd.f32 %v821, %v918
        %v931 = vadd.f32 %v822, %v921
        %932 = vst.msk [vmem:[#allocation2] sm:$0xff] %vm752, %v924
        %933 = vst.msk [vmem:[#allocation2 + $0x8] sm:$0xff] %vm752, %v925
        %934 = vst.msk [vmem:[#allocation2 + $0x10] sm:$0xff] %vm752, %v926
        %935 = vst.msk [vmem:[#allocation2 + $0x18] sm:$0xff] %vm752, %v927
        %936 = vst.msk [vmem:[#allocation2 + $0x20] sm:$0xff] %vm752, %v928
        %937 = vst.msk [vmem:[#allocation2 + $0x28] sm:$0xff] %vm752, %v929
        %938 = vst.msk [vmem:[#allocation2 + $0x30] sm:$0xff] %vm752, %v930
        %939 = vst.msk [vmem:[#allocation2 + $0x38] sm:$0xff] %vm752, %v931
      $region36: #{double_convolution.3} parent=27 // pred_fallthru
        _
      %p940 = scmp.eq.s32.totalorder %s22, 2
      // Predicated region
      $region37: #{double_convolution.3} parent=27 // pred_check
        %p941 = pneg %p940
      $region38: #{double_convolution.3} parent=27 // pred_check_branch
        %943 = sbr.rel (%p941) target = $region40
      $region39: #{double_convolution.3} parent=27 // pred_region
        %v944 = vld [vmem:[#allocation2] sm:$0xff]
        %v945 = vld [vmem:[#allocation2 + $0x8] sm:$0xff]
        %v946 = vld [vmem:[#allocation2 + $0x10] sm:$0xff]
        %v947 = vld [vmem:[#allocation2 + $0x18] sm:$0xff]
        %v948 = vld [vmem:[#allocation2 + $0x20] sm:$0xff]
        %v949 = vld [vmem:[#allocation2 + $0x28] sm:$0xff]
        %v950 = vld [vmem:[#allocation2 + $0x30] sm:$0xff]
        %v951 = vld [vmem:[#allocation2 + $0x38] sm:$0xff]
        %v952 = vpack.c.bf16 %v944, %v944
        %v953 = vpack.c.bf16 %v945, %v945
        %v954 = vpack.c.bf16 %v946, %v946
        %v955 = vpack.c.bf16 %v947, %v947
        %v956 = vpack.c.bf16 %v948, %v948
        %v957 = vpack.c.bf16 %v949, %v949
        %v958 = vpack.c.bf16 %v950, %v950
        %v959 = vpack.c.bf16 %v951, %v951
        %vm960 = vcmask 60416
        %961 = vst.msk [vmem:[%s268] sm:$0xf] %vm960, %v952
        %962 = vst.msk [vmem:[%s268 + $0x4] sm:$0xf] %vm960, %v953
        %963 = vst.msk [vmem:[%s268 + $0x8] sm:$0xf] %vm960, %v954
        %964 = vst.msk [vmem:[%s268 + $0xc] sm:$0xf] %vm960, %v955
        %965 = vst.msk [vmem:[%s268 + $0x10] sm:$0xf] %vm960, %v956
        %966 = vst.msk [vmem:[%s268 + $0x14] sm:$0xf] %vm960, %v957
        %967 = vst.msk [vmem:[%s268 + $0x18] sm:$0xf] %vm960, %v958
        %968 = vst.msk [vmem:[%s268 + $0x1c] sm:$0xf] %vm960, %v959
        %vm969 = vcmask 64512
        %v970 = vsel %vm969, %v944, 0.0
        %v971 = vsel %vm969, %v945, 0.0
        %v972 = vadd.f32 %v970, %v971
        %v973 = vsel %vm969, %v946, 0.0
        %v974 = vadd.f32 %v972, %v973
        %v975 = vsel %vm969, %v947, 0.0
        %v976 = vadd.f32 %v974, %v975
        %v977 = vsel %vm969, %v948, 0.0
        %v978 = vadd.f32 %v976, %v977
        %v979 = vsel %vm969, %v949, 0.0
        %v980 = vadd.f32 %v978, %v979
        %v981 = vsel %vm969, %v950, 0.0
        %v982 = vadd.f32 %v980, %v981
        %v983 = vsel %vm969, %v951, 0.0
        %v984 = vadd.f32 %v982, %v983
        %v985 = vrot.slane %v984, 4
        %v986 = vadd.f32 %v984, %v985
        %v987 = vrot.slane %v986, 2
        %v988 = vadd.f32 %v986, %v987
        %v989 = vrot.slane %v988, 1
        %v990 = vadd.f32 %v988, %v989
        %v991 = vmul.f32 %v944, %v944
        %v992 = vmul.f32 %v945, %v945
        %v993 = vmul.f32 %v946, %v946
        %v994 = vmul.f32 %v947, %v947
        %v995 = vmul.f32 %v948, %v948
        %v996 = vmul.f32 %v949, %v949
        %v997 = vmul.f32 %v950, %v950
        %v998 = vmul.f32 %v951, %v951
        %v999 = vsel %vm969, %v991, 0.0
        %v1000 = vsel %vm969, %v992, 0.0
        %v1001 = vadd.f32 %v999, %v1000
        %v1002 = vsel %vm969, %v993, 0.0
        %v1003 = vadd.f32 %v1001, %v1002
        %v1004 = vsel %vm969, %v994, 0.0
        %v1005 = vadd.f32 %v1003, %v1004
        %v1006 = vsel %vm969, %v995, 0.0
        %v1007 = vadd.f32 %v1005, %v1006
        %v1008 = vsel %vm969, %v996, 0.0
        %v1009 = vadd.f32 %v1007, %v1008
        %v1010 = vsel %vm969, %v997, 0.0
        %v1011 = vadd.f32 %v1009, %v1010
        %v1012 = vsel %vm969, %v998, 0.0
        %v1013 = vadd.f32 %v1011, %v1012
        %v1014 = vrot.slane %v1013, 4
        %v1015 = vadd.f32 %v1013, %v1014
        %v1016 = vrot.slane %v1015, 2
        %v1017 = vadd.f32 %v1015, %v1016
        %v1018 = vrot.slane %v1017, 1
        %v1019 = vadd.f32 %v1017, %v1018
        %vm1020 = vcmask 1040384
        %v1021 = vsel %vm1020, %v990, %v1019
        %vm1022 = vcmask 58368
        %1023 = vst.msk [vmem:[%s276] sm:$0x3] %vm1022, %v1021
      $region40: #{double_convolution.3} parent=27 // pred_fallthru
        _
      %p1024 = scmp.lt.s32.totalorder %s20, 1
      %s1025 = scalar_select %p1024, %s20, 1
      %p1026 = scmp.lt.s32.totalorder %s21, 7
      %s1027 = scalar_select %p1026, %s21, 7
      %s1028 = smul.addr %s1027, 8
      %s1029 = smul.addr %s1025, 64
      %s1030 = sadd.s32 %s1028, %s1029
      %s1031 = smul.addr %s1030, 4
      %s1032 = scalar_lea.vmem %s2, %s1031
      %p1033 = scmp.lt.s32.totalorder %s20, 1
      %s1034 = scalar_select %p1033, %s20, 1
      %p1035 = scmp.lt.s32.totalorder %s21, 7
      %s1036 = scalar_select %p1035, %s21, 7
      %s1037 = smul.addr %s1034, 8
      %s1038 = sadd.s32 %s1036, %s1037
      %s1039 = smul.addr %s1038, 2
      %s1040 = scalar_lea.vmem %s3, %s1039
      // Predicated region
      $region41: #{double_convolution.3} parent=27 // pred_check
        %p1041 = pneg %p115
      $region42: #{double_convolution.3} parent=27 // pred_check_branch
        %1043 = sbr.rel (%p1041) target = $region44
      $region43: #{double_convolution.3} parent=27 // pred_region
        _
      $region44: #{double_convolution.3} parent=27 // pred_fallthru
        _
      // Predicated region
      $region45: #{double_convolution.3} parent=27 // pred_check
        %p1044 = pneg %p143
      $region46: #{double_convolution.3} parent=27 // pred_check_branch
        %1046 = sbr.rel (%p1044) target = $region48
      $region47: #{double_convolution.3} parent=27 // pred_region
        _
      $region48: #{double_convolution.3} parent=27 // pred_fallthru
        _
    $region28: #{double_convolution.3} parent=5 // pred_fallthru
      _
    %p1047 = scmp.le.s32.totalorder 2, %s10
    // Predicated region
    $region49: #{double_convolution.3} parent=5 // pred_check
      %p1048 = pneg %p1047
    $region50: #{double_convolution.3} parent=5 // pred_check_branch
      %1050 = sbr.rel (%p1048) target = $region52
    $region51: #{double_convolution.3} parent=5 // pred_region
      %s1051 = ssub.s32 %s10, 2
      // Predicated region
      $region53: #{double_convolution.3} parent=51 // pred_check
        %p1052 = pneg %p121
      $region54: #{double_convolution.3} parent=51 // pred_check_branch
        %1054 = sbr.rel (%p1052) target = $region56
      $region55: #{double_convolution.3} parent=51 // pred_region
        %p1055 = scmp.lt.s32.totalorder %s23, 1
        %s1056 = scalar_select %p1055, %s23, 1
        %p1057 = scmp.lt.s32.totalorder %s24, 7
        %s1058 = scalar_select %p1057, %s24, 7
        %s1059 = smul.addr %s1058, 8
        %s1060 = smul.addr %s1056, 64
        %s1061 = sadd.s32 %s1059, %s1060
        %s1062 = smul.addr %s1061, 4
        %s1063 = scalar_lea.vmem %s2, %s1062
      $region56: #{double_convolution.3} parent=51 // pred_fallthru
        _
      // Predicated region
      $region57: #{double_convolution.3} parent=51 // pred_check
        %p1064 = pneg %p149
      $region58: #{double_convolution.3} parent=51 // pred_check_branch
        %1066 = sbr.rel (%p1064) target = $region60
      $region59: #{double_convolution.3} parent=51 // pred_region
        %p1067 = scmp.lt.s32.totalorder %s23, 1
        %s1068 = scalar_select %p1067, %s23, 1
        %p1069 = scmp.lt.s32.totalorder %s24, 7
        %s1070 = scalar_select %p1069, %s24, 7
        %s1071 = smul.addr %s1068, 8
        %s1072 = sadd.s32 %s1070, %s1071
        %s1073 = smul.addr %s1072, 2
        %s1074 = scalar_lea.vmem %s3, %s1073
      $region60: #{double_convolution.3} parent=51 // pred_fallthru
        _
    $region52: #{double_convolution.3} parent=5 // pred_fallthru
      _
  $region6: #{double_convolution.3} parent=0 // loop_footer
    %s14 = sadd.s32 1, %s10
  $region7: #{double_convolution.3} parent=0 // loop_footer_branch
    %9 = sbr.rel target = $region3
  $region8: #{double_convolution.3} parent=0 // loop_exit
    _

// kernel: double_convolution.4
$region0: #{double_convolution.4}
  #allocation0 [shape = 'u32[]', space=smem, size = 0x4, offset = 0x4, fixed_abs, tag = 'smem constant byte address 0x4 - core index']
  #allocation1 [shape = 'u32[144,128]{1,0:T(1,128)}', space=vmem, size = 0x12000, scoped, tag = 'internal scratch']
  #allocation2 [shape = 'f32[64,8]{1,0:T(8,128)}', space=vmem, size = 0x8000, scoped, tag = 'scratch operand']
  %s0 = inlined_call_operand.vmem [shape: bf16[2,8,8,8,8], index: 0, kind: input, shape index: {}]
  %s1 = inlined_call_operand.vmem [shape: bf16[3,72,8], index: 1, kind: input, shape index: {}]
  %s2 = inlined_call_operand.vmem [shape: f32[1,8], index: 2, kind: input, shape index: {}]
  %s3 = inlined_call_operand.vmem [shape: f32[1,8], index: 3, kind: input, shape index: {}]
  %s4 = inlined_call_operand.vmem [shape: bf16[2,8,8,8,8], index: 4, kind: output, shape index: {0}]
  %s5 = inlined_call_operand.vmem [shape: f32[2,8,2,8], index: 5, kind: output, shape index: {1}]
  %6 = xla_tuple %s4, %s5
  %s7 = sld [smem:[#allocation0]]
  $region69: #{double_convolution.4} parent=0
    _
  %s9 = ssub.s32 1, %s7
  %s10 = scalar_select 0, %s9, %s7
  loop: start=0, step=1, limit=50
  $region2: #{double_convolution.4} parent=0 // loop_pre_header
    _
  $region3: #{double_convolution.4} parent=0 // loop_header
    %s12 = sphi 0, %s16
    %p13 = scmp.ge.s32.totalorder %s12, 50
    %s19 = sphi 0, %s38
    %s20 = sphi 0, %s34
    %s21 = sphi 0, %s30
    %s22 = sphi 0, %s19
    %s23 = sphi 0, %s20
    %s24 = sphi 0, %s21
    %s25 = sphi 0, %s22
    %s26 = sphi 0, %s23
    %s27 = sphi 0, %s24
    %s55 = sphi 0, %s57
    %s58 = sphi 0, %s55
    %s59 = sphi 0, %s58
    %s75 = sphi 0, %s59
    %s79 = sphi 0, %s79
    %s81 = sphi 0, %s79
    %s82 = sphi 0, %s81
    %s96 = sphi 0, %s82
    %s100 = sphi 0, %s100
    %s102 = sphi 0, %s100
    %s103 = sphi 0, %s102
    %s117 = sphi 0, %s103
    %s121 = sphi 0, %s121
    %s123 = sphi 0, %s121
    %s124 = sphi 0, %s123
    %s138 = sphi 0, %s124
    %s146 = sphi 0, %s148
    %s149 = sphi 0, %s146
    %s150 = sphi 0, %s149
    %s166 = sphi 0, %s150
    %s174 = sphi 0, %s176
    %s177 = sphi 0, %s174
    %s178 = sphi 0, %s177
    %s194 = sphi 0, %s178
  $region4: #{double_convolution.4} parent=0 // loop_header_branch
    %15 = sbr.rel (%p13) target = $region8
  $region5: #{double_convolution.4} parent=0 // loop_body
    %s17 = ssub.s32 %s12, 1
    %s18 = ssub.s32 %s12, 2
    %s28 = sadd.s32 1, %s21
    %p29 = scmp.ge.s32.totalorder %s28, 3
    %s30 = scalar_select %p29, 0, %s28
    %s31 = sadd.s32 1, %s20
    %s32 = scalar_select %p29, %s31, %s20
    %p33 = scmp.ge.s32.totalorder %s32, 8
    %s34 = scalar_select %p33, 0, %s32
    %s35 = sadd.s32 1, %s19
    %s36 = scalar_select %p33, %s35, %s19
    %p37 = scmp.ge.s32.totalorder %s36, 2
    %s38 = scalar_select %p37, 0, %s36
    %s39 = sadd.s32 %s20, %s21
    %s40 = ssub.s32 %s39, 1
    %p41 = scmp.lt.s32.totalorder %s40, 7
    %s42 = scalar_select %p41, %s40, 7
    %p43 = scmp.gt.s32.totalorder %s42, 0
    %s44 = scalar_select %p43, %s42, 0
    %s45 = sadd.s32 %s34, %s30
    %s46 = ssub.s32 %s45, 1
    %p47 = scmp.lt.s32.totalorder %s46, 7
    %s48 = scalar_select %p47, %s46, 7
    %p49 = scmp.gt.s32.totalorder %s48, 0
    %s50 = scalar_select %p49, %s48, 0
    %s51 = ssub.s32 %s19, %s38
    %s52 = ssub.s32 %s44, %s50
    %s53 = sor.u32 %s51, %s52
    %p54 = scmp.eq.s32.totalorder %s53, 0
    %s56 = sadd.s32 %s55, 1
    %s57 = scalar_select %p54, %s55, %s56
    %p60 = pneg %p54
    %p61 = scmp.eq.s32.totalorder %s12, 47
    %p62 = por %p60, %p61
    %p63 = scmp.ne.s32.totalorder %s55, %s58
    %p64 = scmp.eq.s32.totalorder %s12, 0
    %p65 = por %p63, %p64
    %p66 = scmp.ne.s32.totalorder %s55, %s58
    %p67 = scmp.eq.s32.totalorder %s17, 47
    %p68 = por %p66, %p67
    %p69 = scmp.ne.s32.totalorder %s58, %s59
    %p70 = scmp.eq.s32.totalorder %s17, 0
    %p71 = por %p69, %p70
    %p72 = scmp.ne.s32.totalorder %s58, %s59
    %p73 = scmp.eq.s32.totalorder %s18, 47
    %p74 = por %p72, %p73
    %p76 = scmp.ne.s32.totalorder %s59, %s75
    %p77 = scmp.eq.s32.totalorder %s18, 0
    %p78 = por %p76, %p77
    %s80 = sadd.s32 %s79, 1
    %p83 = scmp.eq.s32.totalorder %s12, 47
    %p84 = scmp.ne.s32.totalorder %s79, %s81
    %p85 = scmp.eq.s32.totalorder %s12, 0
    %p86 = por %p84, %p85
    %p87 = scmp.ne.s32.totalorder %s79, %s81
    %p88 = scmp.eq.s32.totalorder %s17, 47
    %p89 = por %p87, %p88
    %p90 = scmp.ne.s32.totalorder %s81, %s82
    %p91 = scmp.eq.s32.totalorder %s17, 0
    %p92 = por %p90, %p91
    %p93 = scmp.ne.s32.totalorder %s81, %s82
    %p94 = scmp.eq.s32.totalorder %s18, 47
    %p95 = por %p93, %p94
    %p97 = scmp.ne.s32.totalorder %s82, %s96
    %p98 = scmp.eq.s32.totalorder %s18, 0
    %p99 = por %p97, %p98
    %s101 = sadd.s32 %s100, 1
    %p104 = scmp.eq.s32.totalorder %s12, 47
    %p105 = scmp.ne.s32.totalorder %s100, %s102
    %p106 = scmp.eq.s32.totalorder %s12, 0
    %p107 = por %p105, %p106
    %p108 = scmp.ne.s32.totalorder %s100, %s102
    %p109 = scmp.eq.s32.totalorder %s17, 47
    %p110 = por %p108, %p109
    %p111 = scmp.ne.s32.totalorder %s102, %s103
    %p112 = scmp.eq.s32.totalorder %s17, 0
    %p113 = por %p111, %p112
    %p114 = scmp.ne.s32.totalorder %s102, %s103
    %p115 = scmp.eq.s32.totalorder %s18, 47
    %p116 = por %p114, %p115
    %p118 = scmp.ne.s32.totalorder %s103, %s117
    %p119 = scmp.eq.s32.totalorder %s18, 0
    %p120 = por %p118, %p119
    %s122 = sadd.s32 %s121, 1
    %p125 = scmp.eq.s32.totalorder %s12, 47
    %p126 = scmp.ne.s32.totalorder %s121, %s123
    %p127 = scmp.eq.s32.totalorder %s12, 0
    %p128 = por %p126, %p127
    %p129 = scmp.ne.s32.totalorder %s121, %s123
    %p130 = scmp.eq.s32.totalorder %s17, 47
    %p131 = por %p129, %p130
    %p132 = scmp.ne.s32.totalorder %s123, %s124
    %p133 = scmp.eq.s32.totalorder %s17, 0
    %p134 = por %p132, %p133
    %p135 = scmp.ne.s32.totalorder %s123, %s124
    %p136 = scmp.eq.s32.totalorder %s18, 47
    %p137 = por %p135, %p136
    %p139 = scmp.ne.s32.totalorder %s124, %s138
    %p140 = scmp.eq.s32.totalorder %s18, 0
    %p141 = por %p139, %p140
    %s142 = ssub.s32 %s19, %s38
    %s143 = ssub.s32 %s20, %s34
    %s144 = sor.u32 %s142, %s143
    %p145 = scmp.eq.s32.totalorder %s144, 0
    %s147 = sadd.s32 %s146, 1
    %s148 = scalar_select %p145, %s146, %s147
    %p151 = pneg %p145
    %p152 = scmp.eq.s32.totalorder %s12, 47
    %p153 = por %p151, %p152
    %p154 = scmp.ne.s32.totalorder %s146, %s149
    %p155 = scmp.eq.s32.totalorder %s12, 0
    %p156 = por %p154, %p155
    %p157 = scmp.ne.s32.totalorder %s146, %s149
    %p158 = scmp.eq.s32.totalorder %s17, 47
    %p159 = por %p157, %p158
    %p160 = scmp.ne.s32.totalorder %s149, %s150
    %p161 = scmp.eq.s32.totalorder %s17, 0
    %p162 = por %p160, %p161
    %p163 = scmp.ne.s32.totalorder %s149, %s150
    %p164 = scmp.eq.s32.totalorder %s18, 47
    %p165 = por %p163, %p164
    %p167 = scmp.ne.s32.totalorder %s150, %s166
    %p168 = scmp.eq.s32.totalorder %s18, 0
    %p169 = por %p167, %p168
    %s170 = ssub.s32 %s19, %s38
    %s171 = ssub.s32 %s20, %s34
    %s172 = sor.u32 %s170, %s171
    %p173 = scmp.eq.s32.totalorder %s172, 0
    %s175 = sadd.s32 %s174, 1
    %s176 = scalar_select %p173, %s174, %s175
    %p179 = pneg %p173
    %p180 = scmp.eq.s32.totalorder %s12, 47
    %p181 = por %p179, %p180
    %p182 = scmp.ne.s32.totalorder %s174, %s177
    %p183 = scmp.eq.s32.totalorder %s12, 0
    %p184 = por %p182, %p183
    %p185 = scmp.ne.s32.totalorder %s174, %s177
    %p186 = scmp.eq.s32.totalorder %s17, 47
    %p187 = por %p185, %p186
    %p188 = scmp.ne.s32.totalorder %s177, %s178
    %p189 = scmp.eq.s32.totalorder %s17, 0
    %p190 = por %p188, %p189
    %p191 = scmp.ne.s32.totalorder %s177, %s178
    %p192 = scmp.eq.s32.totalorder %s18, 47
    %p193 = por %p191, %p192
    %p195 = scmp.ne.s32.totalorder %s178, %s194
    %p196 = scmp.eq.s32.totalorder %s18, 0
    %p197 = por %p195, %p196
    %p198 = scmp.le.s32.totalorder 1, %s12
    %p199 = scmp.lt.s32.totalorder %s12, 49
    %p200 = pnand %p198, %p199
    %p201 = pneg %p200
    // Predicated region
    $region9: #{double_convolution.4} parent=5 // pred_check
      _
    $region10: #{double_convolution.4} parent=5 // pred_check_branch
      %203 = sbr.rel (%p200) target = $region12
    $region11: #{double_convolution.4} parent=5 // pred_region
      %s204 = ssub.s32 %s12, 1
      // Predicated region
      $region13: #{double_convolution.4} parent=11 // pred_check
        %p205 = pneg %p92
      $region14: #{double_convolution.4} parent=11 // pred_check_branch
        %207 = sbr.rel (%p205) target = $region16
      $region15: #{double_convolution.4} parent=11 // pred_region
        _
      $region16: #{double_convolution.4} parent=11 // pred_fallthru
        _
      // Predicated region
      $region17: #{double_convolution.4} parent=11 // pred_check
        %p208 = pneg %p113
      $region18: #{double_convolution.4} parent=11 // pred_check_branch
        %210 = sbr.rel (%p208) target = $region20
      $region19: #{double_convolution.4} parent=11 // pred_region
        _
      $region20: #{double_convolution.4} parent=11 // pred_fallthru
        _
      // Predicated region
      $region21: #{double_convolution.4} parent=11 // pred_check
        %p211 = pneg %p134
      $region22: #{double_convolution.4} parent=11 // pred_check_branch
        %213 = sbr.rel (%p211) target = $region24
      $region23: #{double_convolution.4} parent=11 // pred_region
        _
      $region24: #{double_convolution.4} parent=11 // pred_fallthru
        _
    $region12: #{double_convolution.4} parent=5 // pred_fallthru
      _
    %p214 = scmp.lt.s32.totalorder %s12, 48
    // Predicated region
    $region25: #{double_convolution.4} parent=5 // pred_check
      %p215 = pneg %p214
    $region26: #{double_convolution.4} parent=5 // pred_check_branch
      %217 = sbr.rel (%p215) target = $region28
    $region27: #{double_convolution.4} parent=5 // pred_region
      // Predicated region
      $region29: #{double_convolution.4} parent=27 // pred_check
        %p218 = pneg %p65
      $region30: #{double_convolution.4} parent=27 // pred_check_branch
        %220 = sbr.rel (%p218) target = $region32
      $region31: #{double_convolution.4} parent=27 // pred_region
        %s221 = sadd.s32 %s20, %s21
        %s222 = ssub.s32 %s221, 1
        %p223 = scmp.lt.s32.totalorder %s222, 7
        %s224 = scalar_select %p223, %s222, 7
        %p225 = scmp.gt.s32.totalorder %s224, 0
        %s226 = scalar_select %p225, %s224, 0
        %p227 = scmp.lt.s32.totalorder %s19, 1
        %s228 = scalar_select %p227, %s19, 1
        %p229 = scmp.lt.s32.totalorder %s226, 7
        %s230 = scalar_select %p229, %s226, 7
        %s231 = smul.addr %s230, 8
        %s232 = smul.addr %s228, 64
        %s233 = sadd.s32 %s231, %s232
        %s234 = smul.addr %s233, 4
        %s235 = scalar_lea.vmem %s0, %s234
        %s236 = sadd.s32 %s20, %s21
        %s237 = ssub.s32 %s236, 1
        %p238 = scmp.lt.s32.totalorder %s237, 7
        %s239 = scalar_select %p238, %s237, 7
        %p240 = scmp.gt.s32.totalorder %s239, 0
        %s241 = scalar_select %p240, %s239, 0
      $region32: #{double_convolution.4} parent=27 // pred_fallthru
        _
    $region28: #{double_convolution.4} parent=5 // pred_fallthru
      _
    %p242 = scmp.le.s32.totalorder 1, %s12
    %p243 = scmp.lt.s32.totalorder %s12, 49
    %p244 = pnand %p242, %p243
    %p245 = pneg %p244
    // Predicated region
    $region33: #{double_convolution.4} parent=5 // pred_check
      _
    $region34: #{double_convolution.4} parent=5 // pred_check_branch
      %247 = sbr.rel (%p244) target = $region36
    $region35: #{double_convolution.4} parent=5 // pred_region
      %s248 = ssub.s32 %s12, 1
      %s249 = sadd.s32 %s23, %s24
      %s250 = ssub.s32 %s249, 1
      %p251 = scmp.lt.s32.totalorder %s250, 7
      %s252 = scalar_select %p251, %s250, 7
      %p253 = scmp.gt.s32.totalorder %s252, 0
      %s254 = scalar_select %p253, %s252, 0
      %p255 = scmp.lt.s32.totalorder %s22, 1
      %s256 = scalar_select %p255, %s22, 1
      %p257 = scmp.lt.s32.totalorder %s254, 7
      %s258 = scalar_select %p257, %s254, 7
      %s259 = smul.addr %s258, 8
      %s260 = smul.addr %s256, 64
      %s261 = sadd.s32 %s259, %s260
      %s262 = smul.addr %s261, 4
      %s263 = scalar_lea.vmem %s0, %s262
      %p264 = pneg %p71
      %p265 = pneg %p68
      %p266 = pneg %p92
      %p267 = pneg %p89
      %p268 = pneg %p113
      %p269 = pneg %p110
      %p270 = pneg %p134
      %p271 = pneg %p131
      %p272 = pneg %p162
      %p273 = pneg %p159
      %p274 = scmp.lt.s32.totalorder %s22, 1
      %s275 = scalar_select %p274, %s22, 1
      %p276 = scmp.lt.s32.totalorder %s23, 7
      %s277 = scalar_select %p276, %s23, 7
      %s278 = smul.addr %s277, 8
      %s279 = smul.addr %s275, 64
      %s280 = sadd.s32 %s278, %s279
      %s281 = smul.addr %s280, 4
      %s282 = scalar_lea.vmem %s4, %s281
      %p283 = pneg %p190
      %p284 = pneg %p187
      %p285 = scmp.lt.s32.totalorder %s22, 1
      %s286 = scalar_select %p285, %s22, 1
      %p287 = scmp.lt.s32.totalorder %s23, 7
      %s288 = scalar_select %p287, %s23, 7
      %s289 = smul.addr %s286, 8
      %s290 = sadd.s32 %s288, %s289
      %s291 = smul.addr %s290, 2
      %s292 = scalar_lea.vmem %s5, %s291
      %s293 = sadd.s32 %s23, %s24
      %s294 = ssub.s32 %s293, 1
      %p295 = scmp.lt.s32.totalorder %s294, 7
      %s296 = scalar_select %p295, %s294, 7
      %p297 = scmp.gt.s32.totalorder %s296, 0
      %s298 = scalar_select %p297, %s296, 0
      %p299 = scmp.lt.s32.totalorder %s22, 1
      %s300 = scalar_select %p299, %s22, 1
      %p301 = scmp.lt.s32.totalorder %s298, 7
      %s302 = scalar_select %p301, %s298, 7
      %s303 = smul.addr %s302, 8
      %s304 = smul.addr %s300, 64
      %s305 = sadd.s32 %s303, %s304
      %s306 = smul.addr %s305, 4
      %s307 = scalar_lea.vmem %s0, %s306
      %s308 = sadd.s32 %s23, %s24
      %s309 = ssub.s32 %s308, 1
      %p310 = scmp.lt.s32.totalorder %s309, 7
      %s311 = scalar_select %p310, %s309, 7
      %p312 = scmp.gt.s32.totalorder %s311, 0
      %s313 = scalar_select %p312, %s311, 0
      %p314 = scmp.lt.s32.totalorder %s22, 1
      %s315 = scalar_select %p314, %s22, 1
      %p316 = scmp.lt.s32.totalorder %s23, 7
      %s317 = scalar_select %p316, %s23, 7
      %s318 = smul.addr %s317, 8
      %s319 = smul.addr %s315, 64
      %s320 = sadd.s32 %s318, %s319
      %s321 = smul.addr %s320, 4
      %s322 = scalar_lea.vmem %s4, %s321
      %p323 = scmp.lt.s32.totalorder %s22, 1
      %s324 = scalar_select %p323, %s22, 1
      %p325 = scmp.lt.s32.totalorder %s23, 7
      %s326 = scalar_select %p325, %s23, 7
      %s327 = smul.addr %s324, 8
      %s328 = sadd.s32 %s326, %s327
      %s329 = smul.addr %s328, 2
      %s330 = scalar_lea.vmem %s5, %s329
      %p332 = scmp.eq.s32.totalorder %s24, 0
      // Predicated region
      $region37: #{double_convolution.4} parent=35 // pred_check
        %p333 = pneg %p332
      $region38: #{double_convolution.4} parent=35 // pred_check_branch
        %335 = sbr.rel (%p333) target = $region40
      $region39: #{double_convolution.4} parent=35 // pred_region
        %vm336 = vcmask 64512
        %337 = vst.msk [vmem:[#allocation2] sm:$0xff] %vm336, 0.0
        %338 = vst.msk [vmem:[#allocation2 + $0x8] sm:$0xff] %vm336, 0.0
        %339 = vst.msk [vmem:[#allocation2 + $0x10] sm:$0xff] %vm336, 0.0
        %340 = vst.msk [vmem:[#allocation2 + $0x18] sm:$0xff] %vm336, 0.0
        %341 = vst.msk [vmem:[#allocation2 + $0x20] sm:$0xff] %vm336, 0.0
        %342 = vst.msk [vmem:[#allocation2 + $0x28] sm:$0xff] %vm336, 0.0
        %343 = vst.msk [vmem:[#allocation2 + $0x30] sm:$0xff] %vm336, 0.0
        %344 = vst.msk [vmem:[#allocation2 + $0x38] sm:$0xff] %vm336, 0.0
      $region40: #{double_convolution.4} parent=35 // pred_fallthru
        _
      %s345 = sadd.s32 %s23, %s24
      %s346 = ssub.s32 %s345, 1
      %p347 = scmp.ge.s32.totalorder %s346, 0
      %p348 = scmp.lt.s32.totalorder %s346, 8
      %p349 = pnand %p347, %p348
      %p350 = pneg %p349
      // Predicated region
      $region41: #{double_convolution.4} parent=35 // pred_check
        _
      $region42: #{double_convolution.4} parent=35 // pred_check_branch
        %352 = sbr.rel (%p349) target = $region44
      $region43: #{double_convolution.4} parent=35 // pred_region
        %v353 = vld [vmem:[%s307] sm:$0xf]
        %v354 = vld [vmem:[%s307 + $0x4] sm:$0xf]
        %v355 = vld [vmem:[%s307 + $0x8] sm:$0xf]
        %v356 = vld [vmem:[%s307 + $0xc] sm:$0xf]
        %v357 = vld [vmem:[%s307 + $0x10] sm:$0xf]
        %v358 = vld [vmem:[%s307 + $0x14] sm:$0xf]
        %v359 = vld [vmem:[%s307 + $0x18] sm:$0xf]
        %v360 = vld [vmem:[%s307 + $0x1c] sm:$0xf]
        %v361 = vunpack.c.l.bf16 %v353
        %v362 = vunpack.c.l.bf16 %v354
        %v363 = vunpack.c.l.bf16 %v355
        %v364 = vunpack.c.l.bf16 %v356
        %v365 = vunpack.c.l.bf16 %v357
        %v366 = vunpack.c.l.bf16 %v358
        %v367 = vunpack.c.l.bf16 %v359
        %v368 = vunpack.c.l.bf16 %v360
        %v369 = vld [vmem:[%s2] sm:$0x1]
        %v371 = vlaneseq
        %v372 = vshrl.u32 %v371, 7
        %v373 = vsub.s32 0, %v372
        %v374 = vrot.slane %v369, %v373
        %v376 = vmul.f32 %v361, %v374
        %v377 = vmul.f32 %v362, %v374
        %v378 = vmul.f32 %v363, %v374
        %v379 = vmul.f32 %v364, %v374
        %v380 = vmul.f32 %v365, %v374
        %v381 = vmul.f32 %v366, %v374
        %v382 = vmul.f32 %v367, %v374
        %v383 = vmul.f32 %v368, %v374
        %v384 = vld [vmem:[%s3] sm:$0x1]
        %v386 = vlaneseq
        %v387 = vshrl.u32 %v386, 7
        %v388 = vsub.s32 0, %v387
        %v389 = vrot.slane %v384, %v388
        %v391 = vadd.f32 %v376, %v389
        %v392 = vadd.f32 %v377, %v389
        %v393 = vadd.f32 %v378, %v389
        %v394 = vadd.f32 %v379, %v389
        %v395 = vadd.f32 %v380, %v389
        %v396 = vadd.f32 %v381, %v389
        %v397 = vadd.f32 %v382, %v389
        %v398 = vadd.f32 %v383, %v389
        %v399 = vmax.f32 %v391, 0.0
        %v400 = vmax.f32 %v392, 0.0
        %v401 = vmax.f32 %v393, 0.0
        %v402 = vmax.f32 %v394, 0.0
        %v403 = vmax.f32 %v395, 0.0
        %v404 = vmax.f32 %v396, 0.0
        %v405 = vmax.f32 %v397, 0.0
        %v406 = vmax.f32 %v398, 0.0
        %v407 = vpack.c.bf16 %v399, %v399
        %v408 = vpack.c.bf16 %v400, %v400
        %v409 = vpack.c.bf16 %v401, %v401
        %v410 = vpack.c.bf16 %v402, %v402
        %v411 = vpack.c.bf16 %v403, %v403
        %v412 = vpack.c.bf16 %v404, %v404
        %v413 = vpack.c.bf16 %v405, %v405
        %v414 = vpack.c.bf16 %v406, %v406
        %v416 = vshrl.u32 %v407, 16
        %v418 = vrot.slane %v416, 7
        %v419 = vshll.u32 %v407, 16
        %v421 = vor.u32 %v418, %v419
        %v423 = vshrl.u32 %v408, 16
        %v425 = vrot.slane %v423, 7
        %v426 = vshll.u32 %v408, 16
        %v428 = vor.u32 %v425, %v426
        %v430 = vshrl.u32 %v409, 16
        %v432 = vrot.slane %v430, 7
        %v433 = vshll.u32 %v409, 16
        %v435 = vor.u32 %v432, %v433
        %v437 = vshrl.u32 %v410, 16
        %v439 = vrot.slane %v437, 7
        %v440 = vshll.u32 %v410, 16
        %v442 = vor.u32 %v439, %v440
        %v444 = vshrl.u32 %v411, 16
        %v446 = vrot.slane %v444, 7
        %v447 = vshll.u32 %v411, 16
        %v449 = vor.u32 %v446, %v447
        %v451 = vshrl.u32 %v412, 16
        %v453 = vrot.slane %v451, 7
        %v454 = vshll.u32 %v412, 16
        %v456 = vor.u32 %v453, %v454
        %v458 = vshrl.u32 %v413, 16
        %v460 = vrot.slane %v458, 7
        %v461 = vshll.u32 %v413, 16
        %v463 = vor.u32 %v460, %v461
        %v465 = vshrl.u32 %v414, 16
        %v467 = vrot.slane %v465, 7
        %v468 = vshll.u32 %v414, 16
        %v470 = vor.u32 %v467, %v468
        %vm479 = vcmask 1040384
        %vm480 = vsmask.f32 256
        %vm481 = vmand %vm479, %vm480
        %v482 = vsel %vm481, 0, %v421
        %v483 = vsel %vm481, 0, %v428
        %v484 = vsel %vm481, 0, %v435
        %v485 = vsel %vm481, 0, %v442
        %v486 = vsel %vm481, 0, %v449
        %v487 = vsel %vm481, 0, %v456
        %v488 = vsel %vm481, 0, %v463
        %v489 = vsel %vm481, 0, %v470
        %vm490 = vcmask 1044480
        %vm491 = vsmask.f32 4352
        %vm492 = vmand %vm490, %vm491
        %v493 = vsel %vm492, %v482, 0
        %v494 = vsel %vm492, %v483, 0
        %v495 = vsel %vm492, %v484, 0
        %v496 = vsel %vm492, %v485, 0
        %v497 = vsel %vm492, %v486, 0
        %v498 = vsel %vm492, %v487, 0
        %v499 = vsel %vm492, %v488, 0
        %v500 = vsel %vm492, %v489, 0
        %v509 = vunpack.c.l.b16 0
        %v510 = vunpack.c.h.b16 0
        %v511 = vunpack.c.l.b16 %v493
        %v512 = vunpack.c.h.b16 %v493
        %v513 = vunpack.c.l.b16 %v494
        %v514 = vunpack.c.h.b16 %v494
        %v515 = vunpack.c.l.b16 %v495
        %v516 = vunpack.c.h.b16 %v495
        %v517 = vunpack.c.l.b16 %v496
        %v518 = vunpack.c.h.b16 %v496
        %v519 = vunpack.c.l.b16 %v497
        %v520 = vunpack.c.h.b16 %v497
        %v521 = vunpack.c.l.b16 %v498
        %v522 = vunpack.c.h.b16 %v498
        %v523 = vunpack.c.l.b16 %v499
        %v524 = vunpack.c.h.b16 %v499
        %v525 = vpack.c.b16 %v509, %v509
        %v526 = vpack.c.b16 %v510, %v510
        %v527 = vpack.c.b16 %v511, %v511
        %v528 = vpack.c.b16 %v512, %v512
        %v529 = vpack.c.b16 %v513, %v513
        %v530 = vpack.c.b16 %v514, %v514
        %v531 = vpack.c.b16 %v515, %v515
        %v532 = vpack.c.b16 %v516, %v516
        %v533 = vpack.c.b16 %v517, %v517
        %v534 = vpack.c.b16 %v518, %v518
        %v535 = vpack.c.b16 %v519, %v519
        %v536 = vpack.c.b16 %v520, %v520
        %v537 = vpack.c.b16 %v521, %v521
        %v538 = vpack.c.b16 %v522, %v522
        %v539 = vpack.c.b16 %v523, %v523
        %v540 = vpack.c.b16 %v524, %v524
        %vm541 = vsmask.f32 3328
        %vm542 = vsmask.f32 7440
        %vm543 = vmor %vm541, %vm542
        %v545 = vshrl.u32 %v525, 16
        %v547 = vrot.slane %v545, 4
        %v548 = vshll.u32 %v525, 16
        %v550 = vrot.slane %v548, 5
        %v551 = vor.u32 %v547, %v550
        %v552 = vrot.slane %v551, 4
        %v554 = vshll.u32 %v526, 16
        %v556 = vrot.slane %v554, 5
        %v557 = vsel %vm543, %v552, %v556
        %v559 = vshrl.u32 %v527, 16
        %v561 = vrot.slane %v559, 4
        %v562 = vshll.u32 %v527, 16
        %v564 = vrot.slane %v562, 5
        %v565 = vor.u32 %v561, %v564
        %v566 = vrot.slane %v565, 4
        %v568 = vshll.u32 %v528, 16
        %v570 = vrot.slane %v568, 5
        %v571 = vsel %vm543, %v566, %v570
        %v573 = vshrl.u32 %v529, 16
        %v575 = vrot.slane %v573, 4
        %v576 = vshll.u32 %v529, 16
        %v578 = vrot.slane %v576, 5
        %v579 = vor.u32 %v575, %v578
        %v580 = vrot.slane %v579, 4
        %v582 = vshll.u32 %v530, 16
        %v584 = vrot.slane %v582, 5
        %v585 = vsel %vm543, %v580, %v584
        %v587 = vshrl.u32 %v531, 16
        %v589 = vrot.slane %v587, 4
        %v590 = vshll.u32 %v531, 16
        %v592 = vrot.slane %v590, 5
        %v593 = vor.u32 %v589, %v592
        %v594 = vrot.slane %v593, 4
        %v596 = vshll.u32 %v532, 16
        %v598 = vrot.slane %v596, 5
        %v599 = vsel %vm543, %v594, %v598
        %v601 = vshrl.u32 %v533, 16
        %v603 = vrot.slane %v601, 4
        %v604 = vshll.u32 %v533, 16
        %v606 = vrot.slane %v604, 5
        %v607 = vor.u32 %v603, %v606
        %v608 = vrot.slane %v607, 4
        %v610 = vshll.u32 %v534, 16
        %v612 = vrot.slane %v610, 5
        %v613 = vsel %vm543, %v608, %v612
        %v615 = vshrl.u32 %v535, 16
        %v617 = vrot.slane %v615, 4
        %v618 = vshll.u32 %v535, 16
        %v620 = vrot.slane %v618, 5
        %v621 = vor.u32 %v617, %v620
        %v622 = vrot.slane %v621, 4
        %v624 = vshll.u32 %v536, 16
        %v626 = vrot.slane %v624, 5
        %v627 = vsel %vm543, %v622, %v626
        %v629 = vshrl.u32 %v537, 16
        %v631 = vrot.slane %v629, 4
        %v632 = vshll.u32 %v537, 16
        %v634 = vrot.slane %v632, 5
        %v635 = vor.u32 %v631, %v634
        %v636 = vrot.slane %v635, 4
        %v638 = vshll.u32 %v538, 16
        %v640 = vrot.slane %v638, 5
        %v641 = vsel %vm543, %v636, %v640
        %v643 = vshrl.u32 %v539, 16
        %v645 = vrot.slane %v643, 4
        %v646 = vshll.u32 %v539, 16
        %v648 = vrot.slane %v646, 5
        %v649 = vor.u32 %v645, %v648
        %v650 = vrot.slane %v649, 4
        %v652 = vshll.u32 %v540, 16
        %v654 = vrot.slane %v652, 5
        %v655 = vsel %vm543, %v650, %v654
        %vm656 = vcmask 1042432
        %vm657 = vcmask 1046532
        %vm658 = vmor %vm656, %vm657
        %v659 = vrot.slane %v525, 5
        %v660 = vrot.slane %v659, 4
        %v661 = vrot.slane %v526, 5
        %v662 = vsel %vm658, %v660, %v661
        %v663 = vrot.slane %v527, 5
        %v664 = vrot.slane %v663, 4
        %v665 = vrot.slane %v528, 5
        %v666 = vsel %vm658, %v664, %v665
        %v667 = vrot.slane %v529, 5
        %v668 = vrot.slane %v667, 4
        %v669 = vrot.slane %v530, 5
        %v670 = vsel %vm658, %v668, %v669
        %v671 = vrot.slane %v531, 5
        %v672 = vrot.slane %v671, 4
        %v673 = vrot.slane %v532, 5
        %v674 = vsel %vm658, %v672, %v673
        %v675 = vrot.slane %v533, 5
        %v676 = vrot.slane %v675, 4
        %v677 = vrot.slane %v534, 5
        %v678 = vsel %vm658, %v676, %v677
        %v679 = vrot.slane %v535, 5
        %v680 = vrot.slane %v679, 4
        %v681 = vrot.slane %v536, 5
        %v682 = vsel %vm658, %v680, %v681
        %v683 = vrot.slane %v537, 5
        %v684 = vrot.slane %v683, 4
        %v685 = vrot.slane %v538, 5
        %v686 = vsel %vm658, %v684, %v685
        %v687 = vrot.slane %v539, 5
        %v688 = vrot.slane %v687, 4
        %v689 = vrot.slane %v540, 5
        %v690 = vsel %vm658, %v688, %v689
        %v692 = vunpack.c.l.b16 %v500
        %v693 = vunpack.c.h.b16 %v500
        %v694 = vpack.c.b16 %v692, %v692
        %v695 = vpack.c.b16 %v693, %v693
        %v697 = vshrl.u32 %v694, 16
        %v699 = vrot.slane %v697, 4
        %v700 = vshll.u32 %v694, 16
        %v702 = vrot.slane %v700, 5
        %v703 = vor.u32 %v699, %v702
        %v704 = vrot.slane %v703, 4
        %v706 = vshll.u32 %v695, 16
        %v708 = vrot.slane %v706, 5
        %v709 = vsel %vm543, %v704, %v708
        %v710 = vrot.slane %v694, 5
        %v711 = vrot.slane %v710, 4
        %v712 = vrot.slane %v695, 5
        %v713 = vsel %vm658, %v711, %v712
        %v714 = vpack.c.b16 %v511, %v509
        %v715 = vpack.c.b16 %v515, %v513
        %v716 = vpack.c.b16 %v519, %v517
        %v717 = vpack.c.b16 %v523, %v521
        %v718 = vunpack.c.l.b16 %v557
        %v719 = vunpack.c.l.b16 %v571
        %v720 = vunpack.c.l.b16 %v585
        %v721 = vunpack.c.l.b16 %v599
        %v722 = vunpack.c.l.b16 %v613
        %v723 = vunpack.c.l.b16 %v627
        %v724 = vunpack.c.l.b16 %v641
        %v725 = vunpack.c.l.b16 %v655
        %v726 = vpack.c.b16 %v719, %v718
        %v727 = vpack.c.b16 %v721, %v720
        %v728 = vpack.c.b16 %v723, %v722
        %v729 = vpack.c.b16 %v725, %v724
        %730 = vrot.lane.b32.xlu0 %v726, 8
        %v731 = vpop.permute.xlu0 %730
        %732 = vrot.lane.b32.xlu0 %v727, 8
        %v733 = vpop.permute.xlu0 %732
        %734 = vrot.lane.b32.xlu0 %v728, 8
        %v735 = vpop.permute.xlu0 %734
        %736 = vrot.lane.b32.xlu0 %v729, 8
        %v737 = vpop.permute.xlu0 %736
        %v738 = vunpack.c.l.b16 %v662
        %v739 = vunpack.c.l.b16 %v666
        %v740 = vunpack.c.l.b16 %v670
        %v741 = vunpack.c.l.b16 %v674
        %v742 = vunpack.c.l.b16 %v678
        %v743 = vunpack.c.l.b16 %v682
        %v744 = vunpack.c.l.b16 %v686
        %v745 = vunpack.c.l.b16 %v690
        %v746 = vpack.c.b16 %v739, %v738
        %v747 = vpack.c.b16 %v741, %v740
        %v748 = vpack.c.b16 %v743, %v742
        %v749 = vpack.c.b16 %v745, %v744
        %750 = vrot.lane.b32.xlu0 %v746, 16
        %v751 = vpop.permute.xlu0 %750
        %752 = vrot.lane.b32.xlu0 %v747, 16
        %v753 = vpop.permute.xlu0 %752
        %754 = vrot.lane.b32.xlu0 %v748, 16
        %v755 = vpop.permute.xlu0 %754
        %756 = vrot.lane.b32.xlu0 %v749, 16
        %v757 = vpop.permute.xlu0 %756
        %v758 = vpack.c.b16 %v513, %v511
        %v759 = vpack.c.b16 %v517, %v515
        %v760 = vpack.c.b16 %v521, %v519
        %v761 = vpack.c.b16 %v692, %v523
        %762 = vrot.lane.b32.xlu0 %v758, 24
        %v763 = vpop.permute.xlu0 %762
        %764 = vrot.lane.b32.xlu0 %v759, 24
        %v765 = vpop.permute.xlu0 %764
        %766 = vrot.lane.b32.xlu0 %v760, 24
        %v767 = vpop.permute.xlu0 %766
        %768 = vrot.lane.b32.xlu0 %v761, 24
        %v769 = vpop.permute.xlu0 %768
        %v770 = vunpack.c.l.b16 %v709
        %v771 = vpack.c.b16 %v720, %v719
        %v772 = vpack.c.b16 %v722, %v721
        %v773 = vpack.c.b16 %v724, %v723
        %v774 = vpack.c.b16 %v770, %v725
        %775 = vrot.lane.b32.xlu0 %v771, 32
        %v776 = vpop.permute.xlu0 %775
        %777 = vrot.lane.b32.xlu0 %v772, 32
        %v778 = vpop.permute.xlu0 %777
        %779 = vrot.lane.b32.xlu0 %v773, 32
        %v780 = vpop.permute.xlu0 %779
        %781 = vrot.lane.b32.xlu0 %v774, 32
        %v782 = vpop.permute.xlu0 %781
        %v783 = vunpack.c.l.b16 %v713
        %v784 = vpack.c.b16 %v740, %v739
        %v785 = vpack.c.b16 %v742, %v741
        %v786 = vpack.c.b16 %v744, %v743
        %v787 = vpack.c.b16 %v783, %v745
        %788 = vrot.lane.b32.xlu0 %v784, 40
        %v789 = vpop.permute.xlu0 %788
        %790 = vrot.lane.b32.xlu0 %v785, 40
        %v791 = vpop.permute.xlu0 %790
        %792 = vrot.lane.b32.xlu0 %v786, 40
        %v793 = vpop.permute.xlu0 %792
        %794 = vrot.lane.b32.xlu0 %v787, 40
        %v795 = vpop.permute.xlu0 %794
        %v796 = vpack.c.b16 %v509, %v692
        %797 = vrot.lane.b32.xlu0 %v715, 48
        %v798 = vpop.permute.xlu0 %797
        %799 = vrot.lane.b32.xlu0 %v716, 48
        %v800 = vpop.permute.xlu0 %799
        %801 = vrot.lane.b32.xlu0 %v717, 48
        %v802 = vpop.permute.xlu0 %801
        %803 = vrot.lane.b32.xlu0 %v796, 48
        %v804 = vpop.permute.xlu0 %803
        %v805 = vpack.c.b16 %v718, %v770
        %806 = vrot.lane.b32.xlu0 %v727, 56
        %v807 = vpop.permute.xlu0 %806
        %808 = vrot.lane.b32.xlu0 %v728, 56
        %v809 = vpop.permute.xlu0 %808
        %810 = vrot.lane.b32.xlu0 %v729, 56
        %v811 = vpop.permute.xlu0 %810
        %812 = vrot.lane.b32.xlu0 %v805, 56
        %v813 = vpop.permute.xlu0 %812
        %v814 = vpack.c.b16 %v738, %v783
        %815 = vrot.lane.b32.xlu0 %v747, 64
        %v816 = vpop.permute.xlu0 %815
        %817 = vrot.lane.b32.xlu0 %v748, 64
        %v818 = vpop.permute.xlu0 %817
        %819 = vrot.lane.b32.xlu0 %v749, 64
        %v820 = vpop.permute.xlu0 %819
        %821 = vrot.lane.b32.xlu0 %v814, 64
        %v822 = vpop.permute.xlu0 %821
        %vm823 = vcmask 64512
        %v826 = vsel %vm823, %v714, %v731
        %v829 = vsel %vm823, %v715, %v733
        %v832 = vsel %vm823, %v716, %v735
        %v835 = vsel %vm823, %v717, %v737
        %vm836 = vcmask 130048
        %v838 = vsel %vm836, %v826, %v751
        %v840 = vsel %vm836, %v829, %v753
        %v842 = vsel %vm836, %v832, %v755
        %v844 = vsel %vm836, %v835, %v757
        %vm845 = vcmask 195584
        %v847 = vsel %vm845, %v838, %v763
        %v849 = vsel %vm845, %v840, %v765
        %v851 = vsel %vm845, %v842, %v767
        %v853 = vsel %vm845, %v844, %v769
        %vm854 = vcmask 261120
        %v856 = vsel %vm854, %v847, %v776
        %v858 = vsel %vm854, %v849, %v778
        %v860 = vsel %vm854, %v851, %v780
        %v862 = vsel %vm854, %v853, %v782
        %vm863 = vcmask 326656
        %v865 = vsel %vm863, %v856, %v789
        %v867 = vsel %vm863, %v858, %v791
        %v869 = vsel %vm863, %v860, %v793
        %v871 = vsel %vm863, %v862, %v795
        %vm872 = vcmask 392192
        %v874 = vsel %vm872, %v865, %v798
        %v876 = vsel %vm872, %v867, %v800
        %v878 = vsel %vm872, %v869, %v802
        %v880 = vsel %vm872, %v871, %v804
        %vm881 = vcmask 457728
        %v883 = vsel %vm881, %v874, %v807
        %v885 = vsel %vm881, %v876, %v809
        %v887 = vsel %vm881, %v878, %v811
        %v889 = vsel %vm881, %v880, %v813
        %vm890 = vcmask 523264
        %v892 = vsel %vm890, %v883, %v816
        %v894 = vsel %vm890, %v885, %v818
        %v896 = vsel %vm890, %v887, %v820
        %v898 = vsel %vm890, %v889, %v822
        %v899 = vld [vmem:[#allocation2] sm:$0xff]
        %v900 = vld [vmem:[#allocation2 + $0x8] sm:$0xff]
        %v901 = vld [vmem:[#allocation2 + $0x10] sm:$0xff]
        %v902 = vld [vmem:[#allocation2 + $0x18] sm:$0xff]
        %v903 = vld [vmem:[#allocation2 + $0x20] sm:$0xff]
        %v904 = vld [vmem:[#allocation2 + $0x28] sm:$0xff]
        %v905 = vld [vmem:[#allocation2 + $0x30] sm:$0xff]
        %v906 = vld [vmem:[#allocation2 + $0x38] sm:$0xff]
        %s907 = smul.u32 %s24, 9
        %s908 = smul.addr %s907, 4
        %s909 = scalar_lea.vmem %s1, %s908
        %v910 = vld [vmem:[%s909] sm:$0xf]
        %v911 = vld [vmem:[%s909 + $0x4] sm:$0xf]
        %v912 = vld [vmem:[%s909 + $0x8] sm:$0xf]
        %v913 = vld [vmem:[%s909 + $0xc] sm:$0xf]
        %v914 = vld [vmem:[%s909 + $0x10] sm:$0xf]
        %v915 = vld [vmem:[%s909 + $0x14] sm:$0xf]
        %v916 = vld [vmem:[%s909 + $0x18] sm:$0xf]
        %v917 = vld [vmem:[%s909 + $0x1c] sm:$0xf]
        %v918 = vld [vmem:[%s909 + $0x20] sm:$0xf]
        %v928 = vunpack.c.l.b16 %v910
        %v929 = vunpack.c.l.b16 %v911
        %v930 = vunpack.c.l.b16 %v912
        %v931 = vunpack.c.l.b16 %v913
        %v932 = vunpack.c.l.b16 %v914
        %v933 = vunpack.c.l.b16 %v915
        %v934 = vunpack.c.l.b16 %v916
        %v935 = vunpack.c.l.b16 %v917
        %v936 = vunpack.c.l.b16 %v918
        %v937 = vpack.c.b16 %v929, %v928
        %v938 = vpack.c.b16 %v931, %v930
        %v939 = vpack.c.b16 %v933, %v932
        %v940 = vpack.c.b16 %v935, %v934
        %v941 = vpack.c.b16 %v936, %v936
        %vm946 = vcmask 588800
        %v947 = vsel %vm946, %v892, 0
        %v949 = vsel %vm946, %v894, 0
        %v951 = vsel %vm946, %v896, 0
        %v953 = vsel %vm946, %v898, 0
        %vm955 = vcmask 1043456
        %v957 = vsel %vm955, %v941, 0
        %959 = vmatprep.subr.bf16.mxu0 0
        %960 = vmatpush1.bf16.msra.mxu0 0
        %961 = vmatprep.subr.bf16.mxu0 0
        %962 = vmatpush1.bf16.msra.mxu0 0
        %963 = vmatprep.subr.bf16.mxu0 0
        %964 = vmatpush1.bf16.msra.mxu0 0
        %965 = vmatprep.subr.bf16.mxu0 0
        %966 = vmatpush1.bf16.msra.mxu0 %v957
        %967 = vmatprep.subr.bf16.mxu0 0
        %968 = vmatpush1.bf16.msra.mxu0 %v940
        %969 = vmatprep.subr.bf16.mxu0 0
        %970 = vmatpush1.bf16.msra.mxu0 %v939
        %971 = vmatprep.subr.bf16.mxu0 0
        %972 = vmatpush1.bf16.msra.mxu0 %v938
        %973 = vmatprep.subr.bf16.mxu0 0
        %974 = vmatpush1.bf16.msra.mxu0 %v937
        %975 = vmatprep.subr.bf16.mxu0 0
        %976 = vmatpush2.bf16.msra.mxu0 0
        %977 = vmatprep.subr.bf16.mxu0 0
        %978 = vmatpush2.bf16.msra.mxu0 0
        %979 = vmatprep.subr.bf16.mxu0 0
        %980 = vmatpush2.bf16.msra.mxu0 0
        %981 = vmatprep.subr.bf16.mxu0 0
        %982 = vmatpush2.bf16.msra.mxu0 0
        %983 = vmatprep.subr.bf16.mxu0 0
        %984 = vmatpush2.bf16.msra.mxu0 0
        %985 = vmatprep.subr.bf16.mxu0 0
        %986 = vmatpush2.bf16.msra.mxu0 0
        %987 = vmatprep.subr.bf16.mxu0 0
        %988 = vmatpush2.bf16.msra.mxu0 0
        %989 = vmatprep.subr.bf16.mxu0 0
        %990 = vmatpush2.bf16.msra.mxu0 0
        %991 = vmatprep.mubr.bf16.mxu0 0
        %992 = vmatmul.mubr.bf16.gmra.mxu0 %v947
        %v993 = vpop.f32.mrf.mxu0
        %v994 = vadd.f32 0.0, %v993
        %v995 = vpop.f32.mrf.mxu0
        %v996 = vpop.f32.mrf.mxu0
        %v997 = vadd.f32 0.0, %v996
        %v998 = vpop.f32.mrf.mxu0
        %999 = vmatprep.mubr.bf16.mxu0 0
        %1000 = vmatmul.mubr.bf16.gmra.mxu0 %v949
        %v1001 = vpop.f32.mrf.mxu0
        %v1002 = vadd.f32 0.0, %v1001
        %v1003 = vpop.f32.mrf.mxu0
        %v1004 = vpop.f32.mrf.mxu0
        %v1005 = vadd.f32 0.0, %v1004
        %v1006 = vpop.f32.mrf.mxu0
        %1007 = vmatprep.mubr.bf16.mxu0 0
        %1008 = vmatmul.mubr.bf16.gmra.mxu0 %v951
        %v1009 = vpop.f32.mrf.mxu0
        %v1010 = vadd.f32 0.0, %v1009
        %v1011 = vpop.f32.mrf.mxu0
        %v1012 = vpop.f32.mrf.mxu0
        %v1013 = vadd.f32 0.0, %v1012
        %v1014 = vpop.f32.mrf.mxu0
        %1015 = vmatprep.mubr.bf16.mxu0 0
        %1016 = vmatmul.mubr.bf16.gmra.mxu0 %v953
        %v1017 = vpop.f32.mrf.mxu0
        %v1018 = vadd.f32 0.0, %v1017
        %v1019 = vpop.f32.mrf.mxu0
        %v1020 = vpop.f32.mrf.mxu0
        %v1021 = vadd.f32 0.0, %v1020
        %v1022 = vpop.f32.mrf.mxu0
        %1023 = vdwg.mxu0
        %v1024 = vadd.f32 %v899, %v994
        %v1025 = vadd.f32 %v900, %v997
        %v1026 = vadd.f32 %v901, %v1002
        %v1027 = vadd.f32 %v902, %v1005
        %v1028 = vadd.f32 %v903, %v1010
        %v1029 = vadd.f32 %v904, %v1013
        %v1030 = vadd.f32 %v905, %v1018
        %v1031 = vadd.f32 %v906, %v1021
        %1032 = vst.msk [vmem:[#allocation2] sm:$0xff] %vm823, %v1024
        %1033 = vst.msk [vmem:[#allocation2 + $0x8] sm:$0xff] %vm823, %v1025
        %1034 = vst.msk [vmem:[#allocation2 + $0x10] sm:$0xff] %vm823, %v1026
        %1035 = vst.msk [vmem:[#allocation2 + $0x18] sm:$0xff] %vm823, %v1027
        %1036 = vst.msk [vmem:[#allocation2 + $0x20] sm:$0xff] %vm823, %v1028
        %1037 = vst.msk [vmem:[#allocation2 + $0x28] sm:$0xff] %vm823, %v1029
        %1038 = vst.msk [vmem:[#allocation2 + $0x30] sm:$0xff] %vm823, %v1030
        %1039 = vst.msk [vmem:[#allocation2 + $0x38] sm:$0xff] %vm823, %v1031
      $region44: #{double_convolution.4} parent=35 // pred_fallthru
        _
      %p1040 = scmp.eq.s32.totalorder %s24, 2
      // Predicated region
      $region45: #{double_convolution.4} parent=35 // pred_check
        %p1041 = pneg %p1040
      $region46: #{double_convolution.4} parent=35 // pred_check_branch
        %1043 = sbr.rel (%p1041) target = $region48
      $region47: #{double_convolution.4} parent=35 // pred_region
        %v1044 = vld [vmem:[#allocation2] sm:$0xff]
        %v1045 = vld [vmem:[#allocation2 + $0x8] sm:$0xff]
        %v1046 = vld [vmem:[#allocation2 + $0x10] sm:$0xff]
        %v1047 = vld [vmem:[#allocation2 + $0x18] sm:$0xff]
        %v1048 = vld [vmem:[#allocation2 + $0x20] sm:$0xff]
        %v1049 = vld [vmem:[#allocation2 + $0x28] sm:$0xff]
        %v1050 = vld [vmem:[#allocation2 + $0x30] sm:$0xff]
        %v1051 = vld [vmem:[#allocation2 + $0x38] sm:$0xff]
        %v1052 = vpack.c.bf16 %v1044, %v1044
        %v1053 = vpack.c.bf16 %v1045, %v1045
        %v1054 = vpack.c.bf16 %v1046, %v1046
        %v1055 = vpack.c.bf16 %v1047, %v1047
        %v1056 = vpack.c.bf16 %v1048, %v1048
        %v1057 = vpack.c.bf16 %v1049, %v1049
        %v1058 = vpack.c.bf16 %v1050, %v1050
        %v1059 = vpack.c.bf16 %v1051, %v1051
        %vm1060 = vcmask 60416
        %1061 = vst.msk [vmem:[%s322] sm:$0xf] %vm1060, %v1052
        %1062 = vst.msk [vmem:[%s322 + $0x4] sm:$0xf] %vm1060, %v1053
        %1063 = vst.msk [vmem:[%s322 + $0x8] sm:$0xf] %vm1060, %v1054
        %1064 = vst.msk [vmem:[%s322 + $0xc] sm:$0xf] %vm1060, %v1055
        %1065 = vst.msk [vmem:[%s322 + $0x10] sm:$0xf] %vm1060, %v1056
        %1066 = vst.msk [vmem:[%s322 + $0x14] sm:$0xf] %vm1060, %v1057
        %1067 = vst.msk [vmem:[%s322 + $0x18] sm:$0xf] %vm1060, %v1058
        %1068 = vst.msk [vmem:[%s322 + $0x1c] sm:$0xf] %vm1060, %v1059
        %vm1069 = vcmask 64512
        %v1070 = vsel %vm1069, %v1044, 0.0
        %v1071 = vsel %vm1069, %v1045, 0.0
        %v1072 = vadd.f32 %v1070, %v1071
        %v1073 = vsel %vm1069, %v1046, 0.0
        %v1074 = vadd.f32 %v1072, %v1073
        %v1075 = vsel %vm1069, %v1047, 0.0
        %v1076 = vadd.f32 %v1074, %v1075
        %v1077 = vsel %vm1069, %v1048, 0.0
        %v1078 = vadd.f32 %v1076, %v1077
        %v1079 = vsel %vm1069, %v1049, 0.0
        %v1080 = vadd.f32 %v1078, %v1079
        %v1081 = vsel %vm1069, %v1050, 0.0
        %v1082 = vadd.f32 %v1080, %v1081
        %v1083 = vsel %vm1069, %v1051, 0.0
        %v1084 = vadd.f32 %v1082, %v1083
        %v1085 = vrot.slane %v1084, 4
        %v1086 = vadd.f32 %v1084, %v1085
        %v1087 = vrot.slane %v1086, 2
        %v1088 = vadd.f32 %v1086, %v1087
        %v1089 = vrot.slane %v1088, 1
        %v1090 = vadd.f32 %v1088, %v1089
        %v1091 = vmul.f32 %v1044, %v1044
        %v1092 = vmul.f32 %v1045, %v1045
        %v1093 = vmul.f32 %v1046, %v1046
        %v1094 = vmul.f32 %v1047, %v1047
        %v1095 = vmul.f32 %v1048, %v1048
        %v1096 = vmul.f32 %v1049, %v1049
        %v1097 = vmul.f32 %v1050, %v1050
        %v1098 = vmul.f32 %v1051, %v1051
        %v1099 = vsel %vm1069, %v1091, 0.0
        %v1100 = vsel %vm1069, %v1092, 0.0
        %v1101 = vadd.f32 %v1099, %v1100
        %v1102 = vsel %vm1069, %v1093, 0.0
        %v1103 = vadd.f32 %v1101, %v1102
        %v1104 = vsel %vm1069, %v1094, 0.0
        %v1105 = vadd.f32 %v1103, %v1104
        %v1106 = vsel %vm1069, %v1095, 0.0
        %v1107 = vadd.f32 %v1105, %v1106
        %v1108 = vsel %vm1069, %v1096, 0.0
        %v1109 = vadd.f32 %v1107, %v1108
        %v1110 = vsel %vm1069, %v1097, 0.0
        %v1111 = vadd.f32 %v1109, %v1110
        %v1112 = vsel %vm1069, %v1098, 0.0
        %v1113 = vadd.f32 %v1111, %v1112
        %v1114 = vrot.slane %v1113, 4
        %v1115 = vadd.f32 %v1113, %v1114
        %v1116 = vrot.slane %v1115, 2
        %v1117 = vadd.f32 %v1115, %v1116
        %v1118 = vrot.slane %v1117, 1
        %v1119 = vadd.f32 %v1117, %v1118
        %vm1120 = vcmask 1040384
        %v1121 = vsel %vm1120, %v1090, %v1119
        %vm1122 = vcmask 58368
        %1123 = vst.msk [vmem:[%s330] sm:$0x3] %vm1122, %v1121
      $region48: #{double_convolution.4} parent=35 // pred_fallthru
        _
      %p1124 = scmp.lt.s32.totalorder %s22, 1
      %s1125 = scalar_select %p1124, %s22, 1
      %p1126 = scmp.lt.s32.totalorder %s23, 7
      %s1127 = scalar_select %p1126, %s23, 7
      %s1128 = smul.addr %s1127, 8
      %s1129 = smul.addr %s1125, 64
      %s1130 = sadd.s32 %s1128, %s1129
      %s1131 = smul.addr %s1130, 4
      %s1132 = scalar_lea.vmem %s4, %s1131
      %p1133 = scmp.lt.s32.totalorder %s22, 1
      %s1134 = scalar_select %p1133, %s22, 1
      %p1135 = scmp.lt.s32.totalorder %s23, 7
      %s1136 = scalar_select %p1135, %s23, 7
      %s1137 = smul.addr %s1134, 8
      %s1138 = sadd.s32 %s1136, %s1137
      %s1139 = smul.addr %s1138, 2
      %s1140 = scalar_lea.vmem %s5, %s1139
      // Predicated region
      $region49: #{double_convolution.4} parent=35 // pred_check
        %p1141 = pneg %p159
      $region50: #{double_convolution.4} parent=35 // pred_check_branch
        %1143 = sbr.rel (%p1141) target = $region52
      $region51: #{double_convolution.4} parent=35 // pred_region
        _
      $region52: #{double_convolution.4} parent=35 // pred_fallthru
        _
      // Predicated region
      $region53: #{double_convolution.4} parent=35 // pred_check
        %p1144 = pneg %p187
      $region54: #{double_convolution.4} parent=35 // pred_check_branch
        %1146 = sbr.rel (%p1144) target = $region56
      $region55: #{double_convolution.4} parent=35 // pred_region
        _
      $region56: #{double_convolution.4} parent=35 // pred_fallthru
        _
    $region36: #{double_convolution.4} parent=5 // pred_fallthru
      _
    %p1147 = scmp.le.s32.totalorder 2, %s12
    // Predicated region
    $region57: #{double_convolution.4} parent=5 // pred_check
      %p1148 = pneg %p1147
    $region58: #{double_convolution.4} parent=5 // pred_check_branch
      %1150 = sbr.rel (%p1148) target = $region60
    $region59: #{double_convolution.4} parent=5 // pred_region
      %s1151 = ssub.s32 %s12, 2
      // Predicated region
      $region61: #{double_convolution.4} parent=59 // pred_check
        %p1152 = pneg %p165
      $region62: #{double_convolution.4} parent=59 // pred_check_branch
        %1154 = sbr.rel (%p1152) target = $region64
      $region63: #{double_convolution.4} parent=59 // pred_region
        %p1155 = scmp.lt.s32.totalorder %s25, 1
        %s1156 = scalar_select %p1155, %s25, 1
        %p1157 = scmp.lt.s32.totalorder %s26, 7
        %s1158 = scalar_select %p1157, %s26, 7
        %s1159 = smul.addr %s1158, 8
        %s1160 = smul.addr %s1156, 64
        %s1161 = sadd.s32 %s1159, %s1160
        %s1162 = smul.addr %s1161, 4
        %s1163 = scalar_lea.vmem %s4, %s1162
      $region64: #{double_convolution.4} parent=59 // pred_fallthru
        _
      // Predicated region
      $region65: #{double_convolution.4} parent=59 // pred_check
        %p1164 = pneg %p193
      $region66: #{double_convolution.4} parent=59 // pred_check_branch
        %1166 = sbr.rel (%p1164) target = $region68
      $region67: #{double_convolution.4} parent=59 // pred_region
        %p1167 = scmp.lt.s32.totalorder %s25, 1
        %s1168 = scalar_select %p1167, %s25, 1
        %p1169 = scmp.lt.s32.totalorder %s26, 7
        %s1170 = scalar_select %p1169, %s26, 7
        %s1171 = smul.addr %s1168, 8
        %s1172 = sadd.s32 %s1170, %s1171
        %s1173 = smul.addr %s1172, 2
        %s1174 = scalar_lea.vmem %s5, %s1173
      $region68: #{double_convolution.4} parent=59 // pred_fallthru
        _
    $region60: #{double_convolution.4} parent=5 // pred_fallthru
      _
  $region6: #{double_convolution.4} parent=0 // loop_footer
    %s16 = sadd.s32 1, %s12
  $region7: #{double_convolution.4} parent=0 // loop_footer_branch
    %11 = sbr.rel target = $region3
  $region8: #{double_convolution.4} parent=0 // loop_exit
    _

</llo_original>
